<compile_context>
chip_gen: v5e
topology: v5e:2x2
jax: 0.10.0
libtpu: 0.0.40
codegen_flags: <defaults>
</compile_context>

<pallas_src>
import functools

import jax
import jax.numpy as jnp
import numpy as np
from jax.experimental import pallas as pl
from jax.experimental.pallas import tpu as pltpu


def _grl3d_kernel(x_ref, gamma_ref, beta_ref,
                  w1_ref, b1_ref, w2_ref, b2_ref,
                  wl_ref, bl_ref, o_ref, *, n_chan: int, n_time: int):
    # x_ref: [Bb, Tp, Cp]   gamma/beta/b1/b2: [1, Cp]   w1/w2: [3, Cp, Cp]
    # wl: [Cp, Op]          bl: [1, Op]                 o_ref: [Bb, Tp, Op]
    Bb, Tp, Cp = x_ref.shape
    Op = o_ref.shape[-1]
    M = Bb * Tp
    mm_dtype = w1_ref.dtype                 # bf16 by default, f32 if requested

    x = x_ref[...].reshape(M, Cp)           # rows = flattened (batch, time)

    # ---- GRL: identity in forward ----

    # ---- LayerNorm over the real channels (two-pass, padded lanes masked) ----
    inv_c = 1.0 / n_chan
    mean = jnp.sum(x, axis=-1, keepdims=True) * inv_c
    centered = x - mean
    if Cp != n_chan:                        # zero padded lanes before the square
        lane = jax.lax.broadcasted_iota(jnp.int32, (1, Cp), 1)
        centered = jnp.where(lane < n_chan, centered, 0.0)
    var = jnp.sum(centered * centered, axis=-1, keepdims=True) * inv_c
    # gamma/beta are zero on padded lanes -> padded channels stay exactly 0.
    h = centered * jax.lax.rsqrt(var + 1e-5) * gamma_ref[...] + beta_ref[...]

    # ---- time-shift edge masks (no modulo; iota along the block's time axis).
    # Zeroing edge rows implements the conv's zero padding AND prevents roll
    # leakage across batch elements / padded time rows.
    row_t = jax.lax.broadcasted_iota(jnp.int32, (Bb, Tp, Cp), 1).reshape(M, Cp)
    has_left = row_t >= 1                   # h[t-1] exists
    has_right = row_t <= n_time - 2         # h[t+1] exists (real T, not padded)

    def conv1d_k3_silu(h_f32, w_ref, b_ref):
        # Conv1d(C, C, k=3, pad=1): three accumulating matmuls (no concat).
        h_left = jnp.where(has_left, jnp.roll(h_f32, 1, axis=0), 0.0)
        h_right = jnp.where(has_right, jnp.roll(h_f32, -1, axis=0), 0.0)
        y = jnp.dot(h_f32.astype(mm_dtype), w_ref[1],
                    preferred_element_type=jnp.float32)
        y = y + jnp.dot(h_left.astype(mm_dtype), w_ref[0],
                        preferred_element_type=jnp.float32)
        y = y + jnp.dot(h_right.astype(mm_dtype), w_ref[2],
                        preferred_element_type=jnp.float32)
        y = y + b_ref[...]
        return y * jax.nn.sigmoid(y)        # SiLU in f32

    h = conv1d_k3_silu(h, w1_ref, b1_ref)
    h = conv1d_k3_silu(h, w2_ref, b2_ref)

    # ---- Linear(C, out_dims) ----
    out = jnp.dot(h.astype(mm_dtype), wl_ref[...],
                  preferred_element_type=jnp.float32) + bl_ref[...]
    o_ref[...] = out.reshape(Bb, Tp, Op).astype(o_ref.dtype)


def _round_up(n, m):
    return -(-n // m) * m


def grl3d_classifier(x, params, *, matmul_dtype=jnp.bfloat16,
                     target_rows=512, out_dtype=jnp.float32):
    """x: [B, T, C] float32.  params: dict of torch-shaped weights."""
    B, T, C = x.shape
    O = params["wl"].shape[0]

    LANE, SUB = 128, 8
    Cp = _round_up(C, LANE)
    Op = _round_up(O, LANE)
    Tp = _round_up(T, SUB)                  # keep the in-kernel reshape tile-aligned

    # ---- re-pack parameters into padded, matmul-ready layouts ----
    def pad2(a, r, c):
        return jnp.pad(a, ((0, r - a.shape[0]), (0, c - a.shape[1])))

    gamma = pad2(params["gamma"].reshape(1, C), 1, Cp)
    beta = pad2(params["beta"].reshape(1, C), 1, Cp)
    b1 = pad2(params["b1"].reshape(1, C), 1, Cp)
    b2 = pad2(params["b2"].reshape(1, C), 1, Cp)
    bl = pad2(params["bl"].reshape(1, O), 1, Op)

    def pack_conv(w):
        # torch Conv1d weight [C_out, C_in, 3] -> stacked taps [3, Cp, Cp]
        return jnp.stack([pad2(w[:, :, k].T, Cp, Cp) for k in range(3)],
                         axis=0).astype(matmul_dtype)

    w1 = pack_conv(params["w1"])
    w2 = pack_conv(params["w2"])
    wl = pad2(params["wl"].T, Cp, Op).astype(matmul_dtype)        # [Cp, Op]

    wbytes = jnp.dtype(matmul_dtype).itemsize
    weight_bytes = wbytes * (w1.size + w2.size + wl.size)

    # ---- batch block: target >= target_rows matmul rows per grid step, but
    # keep at least 2 grid steps (both v7x TensorCores) and fit VMEM.
    Bb = max(1, min(B, max(1, target_rows // Tp)))
    if B >= 2:
        Bb = min(Bb, -(-B // 2))

    def vmem_est(bb, wbufs):
        m = bb * Tp
        return (2 * 4 * m * (Cp + Op)       # x/out blocks, double-buffered, f32
                + wbufs * weight_bytes      # conv + linear weights
                + 8 * 4 * m * Cp)           # activation temporaries headroom

    VMEM_BUDGET = 48 << 20                  # v7x-safe (64 MiB physical)
    while Bb > 1 and vmem_est(Bb, 2) > VMEM_BUDGET:
        Bb = max(1, Bb // 2)
    Bp = _round_up(B, Bb)

    x_p = jnp.pad(x, ((0, Bp - B), (0, Tp - T), (0, Cp - C)))

    flops = 2 * Bp * Tp * (2 * 3 * Cp * Cp + Cp * Op)
    cost = pl.CostEstimate(
        flops=int(flops),
        transcendentals=int(Bp * Tp * (2 * Cp + 1)),
        bytes_accessed=int(4 * (x_p.size + Bp * Tp * Op) + weight_bytes))

    kernel = functools.partial(_grl3d_kernel, n_chan=C, n_time=T)

    def run(weight_buffers):
        # Constant-index weights: single-buffer when the build supports it.
        wmode = ({} if weight_buffers is None
                 else dict(pipeline_mode=pl.Buffered(weight_buffers)))

        def const_spec(shape):
            return pl.BlockSpec(shape, lambda b: (0,) * len(shape), **wmode)

        grid_spec = pltpu.PrefetchScalarGridSpec(
            num_scalar_prefetch=0,
            grid=(Bp // Bb,),
            in_specs=[
                pl.BlockSpec((Bb, Tp, Cp), lambda b: (b, 0, 0)),   # x
                const_spec((1, Cp)),                               # gamma
                const_spec((1, Cp)),                               # beta
                const_spec((3, Cp, Cp)),                           # conv1 taps
                const_spec((1, Cp)),                               # conv1 bias
                const_spec((3, Cp, Cp)),                           # conv2 taps
                const_spec((1, Cp)),                               # conv2 bias
                const_spec((Cp, Op)),                              # linear weight
                const_spec((1, Op)),                               # linear bias
            ],
            out_specs=pl.BlockSpec((Bb, Tp, Op), lambda b: (b, 0, 0)),
        )
        nbuf = 2 if weight_buffers is None else weight_buffers
        vmem_limit = int(min(64 << 20, max(32 << 20, 1.5 * vmem_est(Bb, nbuf))))
        return pl.pallas_call(
            kernel,
            out_shape=jax.ShapeDtypeStruct((Bp, Tp, Op), out_dtype),
            grid_spec=grid_spec,
            compiler_params=pltpu.CompilerParams(
                dimension_semantics=("parallel",),
                vmem_limit_bytes=vmem_limit),
            cost_estimate=cost,
        )(x_p, gamma, beta, w1, b1, w2, b2, wl, bl)

    try:
        out = run(1)          # single-buffered resident weights (halves VMEM)
    except Exception:
        out = run(None)       # fallback: default double-buffered weights

    return out[:B, :T, :O]


def ref_forward(x, params):
    """Pure-JAX reference matching the PyTorch module semantics."""
    gamma, beta = params["gamma"], params["beta"]
    w1, b1, w2, b2 = params["w1"], params["b1"], params["w2"], params["b2"]
    wl, bl = params["wl"], params["bl"]
    mean = x.mean(-1, keepdims=True)
    var = ((x - mean) ** 2).mean(-1, keepdims=True)
    h = (x - mean) / jnp.sqrt(var + 1e-5) * gamma + beta

    def conv(h, w, b):
        hp = jnp.pad(h, ((0, 0), (1, 1), (0, 0)))
        y = (jnp.einsum('btc,oc->bto', hp[:, :-2], w[:, :, 0])
             + jnp.einsum('btc,oc->bto', hp[:, 1:-1], w[:, :, 1])
             + jnp.einsum('btc,oc->bto', hp[:, 2:], w[:, :, 2]) + b)
        return jax.nn.silu(y)

    h = conv(h, w1, b1)
    h = conv(h, w2, b2)
    return jnp.einsum('btc,oc->bto', h, wl) + bl


def make_params(key, hidden, out_dims):
    ks = jax.random.split(key, 6)
    scale = 0.1
    return {
        "gamma": jnp.ones((hidden,), jnp.float32),
        "beta": jnp.zeros((hidden,), jnp.float32),
        "w1": scale * jax.random.normal(ks[0], (hidden, hidden, 3), jnp.float32),
        "b1": scale * jax.random.normal(ks[1], (hidden,), jnp.float32),
        "w2": scale * jax.random.normal(ks[2], (hidden, hidden, 3), jnp.float32),
        "b2": scale * jax.random.normal(ks[3], (hidden,), jnp.float32),
        "wl": scale * jax.random.normal(ks[4], (out_dims, hidden), jnp.float32),
        "bl": scale * jax.random.normal(ks[5], (out_dims,), jnp.float32),
    }


if __name__ == "__main__":
    # TODO(synk): GradientReverseFunction's backward (gradient reversal) is a
    # training-time autograd rule; only the (identity) forward is implemented.
    B, T, hidden, out_dims = 2, 8, 32, 16
    key = jax.random.PRNGKey(0)
    kx, kp = jax.random.split(key)
    x = jax.random.normal(kx, (B, T, hidden), jnp.float32)
    params = make_params(kp, hidden, out_dims)

    ref = ref_forward(x, params)

    # Tight numerical check with f32 matmul operands.
    out_f32 = jax.block_until_ready(
        grl3d_classifier(x, params, matmul_dtype=jnp.float32))
    np.testing.assert_allclose(np.asarray(out_f32), np.asarray(ref),
                               rtol=2e-4, atol=2e-4)

    # Default path: bf16 MXU operands with f32 accumulation (looser tolerance).
    out_bf16 = jax.block_until_ready(grl3d_classifier(x, params))
    np.testing.assert_allclose(np.asarray(out_bf16), np.asarray(ref),
                               rtol=2e-2, atol=2e-2)

    print("KERNEL_OK")
</pallas_src>

<mosaic_0001>
module attributes {stable_mosaic.version = 11 : i64} {
  func.func @_grl3d_kernel(%arg0: i32, %arg1: memref<1x8x128xf32, #tpu.memory_space<vmem>>, %arg2: memref<1x128xf32, #tpu.memory_space<vmem>>, %arg3: memref<1x128xf32, #tpu.memory_space<vmem>>, %arg4: memref<3x128x128xf32, #tpu.memory_space<vmem>>, %arg5: memref<1x128xf32, #tpu.memory_space<vmem>>, %arg6: memref<3x128x128xf32, #tpu.memory_space<vmem>>, %arg7: memref<1x128xf32, #tpu.memory_space<vmem>>, %arg8: memref<128x128xf32, #tpu.memory_space<vmem>>, %arg9: memref<1x128xf32, #tpu.memory_space<vmem>>, %arg10: memref<1x8x128xf32, #tpu.memory_space<vmem>>) attributes {dimension_semantics = [#tpu.dimension_semantics<parallel>], iteration_bounds = array<i64: 2>, scalar_prefetch = 0 : i64, scratch_operands = 0 : i64, tpu.core_type = #tpu.core_type<tc>, window_params = [{transform_indices = @transform_0, window_bounds = array<i64: 1, 8, 128>}, {pipeline_mode = #tpu.pipeline_mode<synchronous>, transform_indices = @transform_1, window_bounds = array<i64: 1, 128>}, {pipeline_mode = #tpu.pipeline_mode<synchronous>, transform_indices = @transform_2, window_bounds = array<i64: 1, 128>}, {pipeline_mode = #tpu.pipeline_mode<synchronous>, transform_indices = @transform_3, window_bounds = array<i64: 3, 128, 128>}, {pipeline_mode = #tpu.pipeline_mode<synchronous>, transform_indices = @transform_4, window_bounds = array<i64: 1, 128>}, {pipeline_mode = #tpu.pipeline_mode<synchronous>, transform_indices = @transform_5, window_bounds = array<i64: 3, 128, 128>}, {pipeline_mode = #tpu.pipeline_mode<synchronous>, transform_indices = @transform_6, window_bounds = array<i64: 1, 128>}, {pipeline_mode = #tpu.pipeline_mode<synchronous>, transform_indices = @transform_7, window_bounds = array<i64: 128, 128>}, {pipeline_mode = #tpu.pipeline_mode<synchronous>, transform_indices = @transform_8, window_bounds = array<i64: 1, 128>}, {transform_indices = @transform_9, window_bounds = array<i64: 1, 8, 128>}]} {
    %c0 = arith.constant 0 : index
    %c0_0 = arith.constant 0 : index
    %c0_1 = arith.constant 0 : index
    %0 = vector.load %arg1[%c0, %c0_0, %c0_1] : memref<1x8x128xf32, #tpu.memory_space<vmem>>, vector<1x8x128xf32>
    %1 = vector.shape_cast %0 : vector<1x8x128xf32> to vector<8x128xf32>
    %cst = arith.constant dense<0.000000e+00> : vector<8xf32>
    %2 = vector.multi_reduction <add>, %1, %cst [1] : vector<8x128xf32> to vector<8xf32>
    %3 = vector.shape_cast %2 : vector<8xf32> to vector<8x1xf32>
    %cst_2 = arith.constant 3.125000e-02 : f32
    %4 = vector.broadcast %cst_2 : f32 to vector<8x1xf32>
    %5 = arith.mulf %3, %4 : vector<8x1xf32>
    %6 = vector.broadcast %5 : vector<8x1xf32> to vector<8x128xf32>
    %7 = arith.subf %1, %6 : vector<8x128xf32>
    %8 = tpu.iota {dimensions = array<i32: 1>} : vector<1x128xi32>
    %c32_i32 = arith.constant 32 : i32
    %9 = vector.broadcast %c32_i32 : i32 to vector<1x128xi32>
    %10 = arith.cmpi slt, %8, %9 : vector<1x128xi32>
    %cst_3 = arith.constant 0.000000e+00 : f32
    %11 = vector.shape_cast %10 : vector<1x128xi1> to vector<1x128xi1>
    %12 = vector.broadcast %11 : vector<1x128xi1> to vector<8x128xi1>
    %13 = vector.broadcast %cst_3 : f32 to vector<8x128xf32>
    %14 = arith.select %12, %7, %13 : vector<8x128xi1>, vector<8x128xf32>
    %15 = arith.mulf %14, %14 : vector<8x128xf32>
    %cst_4 = arith.constant dense<0.000000e+00> : vector<8xf32>
    %16 = vector.multi_reduction <add>, %15, %cst_4 [1] : vector<8x128xf32> to vector<8xf32>
    %17 = vector.shape_cast %16 : vector<8xf32> to vector<8x1xf32>
    %cst_5 = arith.constant 3.125000e-02 : f32
    %18 = vector.broadcast %cst_5 : f32 to vector<8x1xf32>
    %19 = arith.mulf %17, %18 : vector<8x1xf32>
    %cst_6 = arith.constant 9.99999974E-6 : f32
    %20 = vector.broadcast %cst_6 : f32 to vector<8x1xf32>
    %21 = arith.addf %19, %20 : vector<8x1xf32>
    %22 = math.rsqrt %21 : vector<8x1xf32>
    %23 = vector.broadcast %22 : vector<8x1xf32> to vector<8x128xf32>
    %24 = arith.mulf %14, %23 : vector<8x128xf32>
    %c0_7 = arith.constant 0 : index
    %c0_8 = arith.constant 0 : index
    %25 = vector.load %arg2[%c0_7, %c0_8] : memref<1x128xf32, #tpu.memory_space<vmem>>, vector<1x128xf32>
    %26 = vector.broadcast %25 : vector<1x128xf32> to vector<8x128xf32>
    %27 = arith.mulf %24, %26 : vector<8x128xf32>
    %c0_9 = arith.constant 0 : index
    %c0_10 = arith.constant 0 : index
    %28 = vector.load %arg3[%c0_9, %c0_10] : memref<1x128xf32, #tpu.memory_space<vmem>>, vector<1x128xf32>
    %29 = vector.broadcast %28 : vector<1x128xf32> to vector<8x128xf32>
    %30 = arith.addf %27, %29 : vector<8x128xf32>
    %31 = tpu.iota {dimensions = array<i32: 1>} : vector<1x8x128xi32>
    %32 = vector.shape_cast %31 : vector<1x8x128xi32> to vector<8x128xi32>
    %c1_i32 = arith.constant 1 : i32
    %33 = vector.broadcast %c1_i32 : i32 to vector<8x128xi32>
    %34 = arith.cmpi sge, %32, %33 : vector<8x128xi32>
    %c6_i32 = arith.constant 6 : i32
    %35 = vector.broadcast %c6_i32 : i32 to vector<8x128xi32>
    %36 = arith.cmpi sle, %32, %35 : vector<8x128xi32>
    %37 = vector.extract_strided_slice %30 {offsets = [7, 0], sizes = [1, 128], strides = [1, 1]} : vector<8x128xf32> to vector<1x128xf32>
    %38 = vector.extract_strided_slice %30 {offsets = [0, 0], sizes = [7, 128], strides = [1, 1]} : vector<8x128xf32> to vector<7x128xf32>
    %39 = tpu.concatenate %37, %38 in 0 : vector<1x128xf32>, vector<7x128xf32> -> vector<8x128xf32>
    %cst_11 = arith.constant 0.000000e+00 : f32
    %40 = vector.broadcast %cst_11 : f32 to vector<8x128xf32>
    %41 = arith.select %34, %39, %40 : vector<8x128xi1>, vector<8x128xf32>
    %42 = vector.extract_strided_slice %30 {offsets = [1, 0], sizes = [7, 128], strides = [1, 1]} : vector<8x128xf32> to vector<7x128xf32>
    %43 = vector.extract_strided_slice %30 {offsets = [0, 0], sizes = [1, 128], strides = [1, 1]} : vector<8x128xf32> to vector<1x128xf32>
    %44 = tpu.concatenate %42, %43 in 0 : vector<7x128xf32>, vector<1x128xf32> -> vector<8x128xf32>
    %cst_12 = arith.constant 0.000000e+00 : f32
    %45 = vector.broadcast %cst_12 : f32 to vector<8x128xf32>
    %46 = arith.select %36, %44, %45 : vector<8x128xi1>, vector<8x128xf32>
    %c1 = arith.constant 1 : index
    %c0_13 = arith.constant 0 : index
    %c0_14 = arith.constant 0 : index
    %47 = vector.load %arg4[%c1, %c0_13, %c0_14] : memref<3x128x128xf32, #tpu.memory_space<vmem>>, vector<1x128x128xf32>
    %48 = vector.shape_cast %47 : vector<1x128x128xf32> to vector<128x128xf32>
    %cst_15 = arith.constant dense<0.000000e+00> : vector<8x128xf32>
    %49 = tpu.matmul %30, %48, %cst_15 {dimension_numbers = #tpu.dot_dimension_numbers<[1], [0], [0], [1], [0, 0, 1, 1], [], []>} : vector<8x128xf32>, vector<128x128xf32>, vector<8x128xf32> -> vector<8x128xf32>
    %c0_16 = arith.constant 0 : index
    %c0_17 = arith.constant 0 : index
    %c0_18 = arith.constant 0 : index
    %50 = vector.load %arg4[%c0_16, %c0_17, %c0_18] : memref<3x128x128xf32, #tpu.memory_space<vmem>>, vector<1x128x128xf32>
    %51 = vector.shape_cast %50 : vector<1x128x128xf32> to vector<128x128xf32>
    %cst_19 = arith.constant dense<0.000000e+00> : vector<8x128xf32>
    %52 = tpu.matmul %41, %51, %cst_19 {dimension_numbers = #tpu.dot_dimension_numbers<[1], [0], [0], [1], [0, 0, 1, 1], [], []>} : vector<8x128xf32>, vector<128x128xf32>, vector<8x128xf32> -> vector<8x128xf32>
    %53 = arith.addf %49, %52 : vector<8x128xf32>
    %c2 = arith.constant 2 : index
    %c0_20 = arith.constant 0 : index
    %c0_21 = arith.constant 0 : index
    %54 = vector.load %arg4[%c2, %c0_20, %c0_21] : memref<3x128x128xf32, #tpu.memory_space<vmem>>, vector<1x128x128xf32>
    %55 = vector.shape_cast %54 : vector<1x128x128xf32> to vector<128x128xf32>
    %cst_22 = arith.constant dense<0.000000e+00> : vector<8x128xf32>
    %56 = tpu.matmul %46, %55, %cst_22 {dimension_numbers = #tpu.dot_dimension_numbers<[1], [0], [0], [1], [0, 0, 1, 1], [], []>} : vector<8x128xf32>, vector<128x128xf32>, vector<8x128xf32> -> vector<8x128xf32>
    %57 = arith.addf %53, %56 : vector<8x128xf32>
    %c0_23 = arith.constant 0 : index
    %c0_24 = arith.constant 0 : index
    %58 = vector.load %arg5[%c0_23, %c0_24] : memref<1x128xf32, #tpu.memory_space<vmem>>, vector<1x128xf32>
    %59 = vector.broadcast %58 : vector<1x128xf32> to vector<8x128xf32>
    %60 = arith.addf %57, %59 : vector<8x128xf32>
    %61 = arith.negf %60 : vector<8x128xf32>
    %62 = math.exp %61 : vector<8x128xf32>
    %cst_25 = arith.constant 1.000000e+00 : f32
    %63 = vector.broadcast %cst_25 : f32 to vector<8x128xf32>
    %64 = arith.addf %63, %62 : vector<8x128xf32>
    %65 = arith.divf %63, %64 : vector<8x128xf32>
    %66 = arith.mulf %60, %65 : vector<8x128xf32>
    %67 = vector.extract_strided_slice %66 {offsets = [7, 0], sizes = [1, 128], strides = [1, 1]} : vector<8x128xf32> to vector<1x128xf32>
    %68 = vector.extract_strided_slice %66 {offsets = [0, 0], sizes = [7, 128], strides = [1, 1]} : vector<8x128xf32> to vector<7x128xf32>
    %69 = tpu.concatenate %67, %68 in 0 : vector<1x128xf32>, vector<7x128xf32> -> vector<8x128xf32>
    %cst_26 = arith.constant 0.000000e+00 : f32
    %70 = vector.broadcast %cst_26 : f32 to vector<8x128xf32>
    %71 = arith.select %34, %69, %70 : vector<8x128xi1>, vector<8x128xf32>
    %72 = vector.extract_strided_slice %66 {offsets = [1, 0], sizes = [7, 128], strides = [1, 1]} : vector<8x128xf32> to vector<7x128xf32>
    %73 = vector.extract_strided_slice %66 {offsets = [0, 0], sizes = [1, 128], strides = [1, 1]} : vector<8x128xf32> to vector<1x128xf32>
    %74 = tpu.concatenate %72, %73 in 0 : vector<7x128xf32>, vector<1x128xf32> -> vector<8x128xf32>
    %cst_27 = arith.constant 0.000000e+00 : f32
    %75 = vector.broadcast %cst_27 : f32 to vector<8x128xf32>
    %76 = arith.select %36, %74, %75 : vector<8x128xi1>, vector<8x128xf32>
    %c1_28 = arith.constant 1 : index
    %c0_29 = arith.constant 0 : index
    %c0_30 = arith.constant 0 : index
    %77 = vector.load %arg6[%c1_28, %c0_29, %c0_30] : memref<3x128x128xf32, #tpu.memory_space<vmem>>, vector<1x128x128xf32>
    %78 = vector.shape_cast %77 : vector<1x128x128xf32> to vector<128x128xf32>
    %cst_31 = arith.constant dense<0.000000e+00> : vector<8x128xf32>
    %79 = tpu.matmul %66, %78, %cst_31 {dimension_numbers = #tpu.dot_dimension_numbers<[1], [0], [0], [1], [0, 0, 1, 1], [], []>} : vector<8x128xf32>, vector<128x128xf32>, vector<8x128xf32> -> vector<8x128xf32>
    %c0_32 = arith.constant 0 : index
    %c0_33 = arith.constant 0 : index
    %c0_34 = arith.constant 0 : index
    %80 = vector.load %arg6[%c0_32, %c0_33, %c0_34] : memref<3x128x128xf32, #tpu.memory_space<vmem>>, vector<1x128x128xf32>
    %81 = vector.shape_cast %80 : vector<1x128x128xf32> to vector<128x128xf32>
    %cst_35 = arith.constant dense<0.000000e+00> : vector<8x128xf32>
    %82 = tpu.matmul %71, %81, %cst_35 {dimension_numbers = #tpu.dot_dimension_numbers<[1], [0], [0], [1], [0, 0, 1, 1], [], []>} : vector<8x128xf32>, vector<128x128xf32>, vector<8x128xf32> -> vector<8x128xf32>
    %83 = arith.addf %79, %82 : vector<8x128xf32>
    %c2_36 = arith.constant 2 : index
    %c0_37 = arith.constant 0 : index
    %c0_38 = arith.constant 0 : index
    %84 = vector.load %arg6[%c2_36, %c0_37, %c0_38] : memref<3x128x128xf32, #tpu.memory_space<vmem>>, vector<1x128x128xf32>
    %85 = vector.shape_cast %84 : vector<1x128x128xf32> to vector<128x128xf32>
    %cst_39 = arith.constant dense<0.000000e+00> : vector<8x128xf32>
    %86 = tpu.matmul %76, %85, %cst_39 {dimension_numbers = #tpu.dot_dimension_numbers<[1], [0], [0], [1], [0, 0, 1, 1], [], []>} : vector<8x128xf32>, vector<128x128xf32>, vector<8x128xf32> -> vector<8x128xf32>
    %87 = arith.addf %83, %86 : vector<8x128xf32>
    %c0_40 = arith.constant 0 : index
    %c0_41 = arith.constant 0 : index
    %88 = vector.load %arg7[%c0_40, %c0_41] : memref<1x128xf32, #tpu.memory_space<vmem>>, vector<1x128xf32>
    %89 = vector.broadcast %88 : vector<1x128xf32> to vector<8x128xf32>
    %90 = arith.addf %87, %89 : vector<8x128xf32>
    %91 = arith.negf %90 : vector<8x128xf32>
    %92 = math.exp %91 : vector<8x128xf32>
    %cst_42 = arith.constant 1.000000e+00 : f32
    %93 = vector.broadcast %cst_42 : f32 to vector<8x128xf32>
    %94 = arith.addf %93, %92 : vector<8x128xf32>
    %95 = arith.divf %93, %94 : vector<8x128xf32>
    %96 = arith.mulf %90, %95 : vector<8x128xf32>
    %c0_43 = arith.constant 0 : index
    %c0_44 = arith.constant 0 : index
    %97 = vector.load %arg8[%c0_43, %c0_44] : memref<128x128xf32, #tpu.memory_space<vmem>>, vector<128x128xf32>
    %cst_45 = arith.constant dense<0.000000e+00> : vector<8x128xf32>
    %98 = tpu.matmul %96, %97, %cst_45 {dimension_numbers = #tpu.dot_dimension_numbers<[1], [0], [0], [1], [0, 0, 1, 1], [], []>} : vector<8x128xf32>, vector<128x128xf32>, vector<8x128xf32> -> vector<8x128xf32>
    %c0_46 = arith.constant 0 : index
    %c0_47 = arith.constant 0 : index
    %99 = vector.load %arg9[%c0_46, %c0_47] : memref<1x128xf32, #tpu.memory_space<vmem>>, vector<1x128xf32>
    %100 = vector.broadcast %99 : vector<1x128xf32> to vector<8x128xf32>
    %101 = arith.addf %98, %100 : vector<8x128xf32>
    %102 = vector.shape_cast %101 : vector<8x128xf32> to vector<1x8x128xf32>
    %c0_48 = arith.constant 0 : index
    %c0_49 = arith.constant 0 : index
    %c0_50 = arith.constant 0 : index
    %103 = vector.load %arg10[%c0_48, %c0_49, %c0_50] : memref<1x8x128xf32, #tpu.memory_space<vmem>>, vector<1x8x128xf32>
    tpu.vector_store %arg10[%c0_48, %c0_49, %c0_50], %102 {strides = array<i32>} : memref<1x8x128xf32, #tpu.memory_space<vmem>>, vector<1x8x128xf32>,
    return
  }
  func.func @transform_0(%arg0: i32) -> (i32, i32, i32) {
    %c0_i32 = arith.constant 0 : i32
    %c0_i32_0 = arith.constant 0 : i32
    %c0_i32_1 = arith.constant 0 : i32
    return %arg0, %c0_i32, %c0_i32_0 : i32, i32, i32
  }
  func.func @transform_1(%arg0: i32) -> (i32, i32) {
    %c0_i32 = arith.constant 0 : i32
    %c0_i32_0 = arith.constant 0 : i32
    %c0_i32_1 = arith.constant 0 : i32
    return %c0_i32, %c0_i32_0 : i32, i32
  }
  func.func @transform_2(%arg0: i32) -> (i32, i32) {
    %c0_i32 = arith.constant 0 : i32
    %c0_i32_0 = arith.constant 0 : i32
    %c0_i32_1 = arith.constant 0 : i32
    return %c0_i32, %c0_i32_0 : i32, i32
  }
  func.func @transform_3(%arg0: i32) -> (i32, i32, i32) {
    %c0_i32 = arith.constant 0 : i32
    %c0_i32_0 = arith.constant 0 : i32
    %c0_i32_1 = arith.constant 0 : i32
    %c0_i32_2 = arith.constant 0 : i32
    return %c0_i32, %c0_i32_0, %c0_i32_1 : i32, i32, i32
  }
  func.func @transform_4(%arg0: i32) -> (i32, i32) {
    %c0_i32 = arith.constant 0 : i32
    %c0_i32_0 = arith.constant 0 : i32
    %c0_i32_1 = arith.constant 0 : i32
    return %c0_i32, %c0_i32_0 : i32, i32
  }
  func.func @transform_5(%arg0: i32) -> (i32, i32, i32) {
    %c0_i32 = arith.constant 0 : i32
    %c0_i32_0 = arith.constant 0 : i32
    %c0_i32_1 = arith.constant 0 : i32
    %c0_i32_2 = arith.constant 0 : i32
    return %c0_i32, %c0_i32_0, %c0_i32_1 : i32, i32, i32
  }
  func.func @transform_6(%arg0: i32) -> (i32, i32) {
    %c0_i32 = arith.constant 0 : i32
    %c0_i32_0 = arith.constant 0 : i32
    %c0_i32_1 = arith.constant 0 : i32
    return %c0_i32, %c0_i32_0 : i32, i32
  }
  func.func @transform_7(%arg0: i32) -> (i32, i32) {
    %c0_i32 = arith.constant 0 : i32
    %c0_i32_0 = arith.constant 0 : i32
    %c0_i32_1 = arith.constant 0 : i32
    return %c0_i32, %c0_i32_0 : i32, i32
  }
  func.func @transform_8(%arg0: i32) -> (i32, i32) {
    %c0_i32 = arith.constant 0 : i32
    %c0_i32_0 = arith.constant 0 : i32
    %c0_i32_1 = arith.constant 0 : i32
    return %c0_i32, %c0_i32_0 : i32, i32
  }
  func.func @transform_9(%arg0: i32) -> (i32, i32, i32) {
    %c0_i32 = arith.constant 0 : i32
    %c0_i32_0 = arith.constant 0 : i32
    %c0_i32_1 = arith.constant 0 : i32
    return %arg0, %c0_i32, %c0_i32_0 : i32, i32, i32
  }
}

module attributes {stable_mosaic.version = 11 : i64} {
  func.func @_grl3d_kernel(%arg0: i32, %arg1: memref<1x8x128xf32, #tpu.memory_space<vmem>>, %arg2: memref<1x128xf32, #tpu.memory_space<vmem>>, %arg3: memref<1x128xf32, #tpu.memory_space<vmem>>, %arg4: memref<3x128x128xf32, #tpu.memory_space<vmem>>, %arg5: memref<1x128xf32, #tpu.memory_space<vmem>>, %arg6: memref<3x128x128xf32, #tpu.memory_space<vmem>>, %arg7: memref<1x128xf32, #tpu.memory_space<vmem>>, %arg8: memref<128x128xf32, #tpu.memory_space<vmem>>, %arg9: memref<1x128xf32, #tpu.memory_space<vmem>>, %arg10: memref<1x8x128xf32, #tpu.memory_space<vmem>>) attributes {dimension_semantics = [#tpu.dimension_semantics<parallel>], iteration_bounds = array<i64: 2>, scalar_prefetch = 0 : i64, scratch_operands = 0 : i64, tpu.core_type = #tpu.core_type<tc>, window_params = [{transform_indices = @transform_0, window_bounds = array<i64: 1, 8, 128>}, {pipeline_mode = #tpu.pipeline_mode<synchronous>, transform_indices = @transform_1, window_bounds = array<i64: 1, 128>}, {pipeline_mode = #tpu.pipeline_mode<synchronous>, transform_indices = @transform_2, window_bounds = array<i64: 1, 128>}, {pipeline_mode = #tpu.pipeline_mode<synchronous>, transform_indices = @transform_3, window_bounds = array<i64: 3, 128, 128>}, {pipeline_mode = #tpu.pipeline_mode<synchronous>, transform_indices = @transform_4, window_bounds = array<i64: 1, 128>}, {pipeline_mode = #tpu.pipeline_mode<synchronous>, transform_indices = @transform_5, window_bounds = array<i64: 3, 128, 128>}, {pipeline_mode = #tpu.pipeline_mode<synchronous>, transform_indices = @transform_6, window_bounds = array<i64: 1, 128>}, {pipeline_mode = #tpu.pipeline_mode<synchronous>, transform_indices = @transform_7, window_bounds = array<i64: 128, 128>}, {pipeline_mode = #tpu.pipeline_mode<synchronous>, transform_indices = @transform_8, window_bounds = array<i64: 1, 128>}, {transform_indices = @transform_9, window_bounds = array<i64: 1, 8, 128>}]} {
    %c0 = arith.constant 0 : index
    %c0_0 = arith.constant 0 : index
    %c0_1 = arith.constant 0 : index
    %0 = vector.load %arg1[%c0, %c0_0, %c0_1] : memref<1x8x128xf32, #tpu.memory_space<vmem>>, vector<1x8x128xf32>
    %1 = vector.shape_cast %0 : vector<1x8x128xf32> to vector<8x128xf32>
    %cst = arith.constant dense<0.000000e+00> : vector<8xf32>
    %2 = vector.multi_reduction <add>, %1, %cst [1] : vector<8x128xf32> to vector<8xf32>
    %3 = vector.shape_cast %2 : vector<8xf32> to vector<8x1xf32>
    %cst_2 = arith.constant 3.125000e-02 : f32
    %4 = vector.broadcast %cst_2 : f32 to vector<8x1xf32>
    %5 = arith.mulf %3, %4 : vector<8x1xf32>
    %6 = vector.broadcast %5 : vector<8x1xf32> to vector<8x128xf32>
    %7 = arith.subf %1, %6 : vector<8x128xf32>
    %8 = tpu.iota {dimensions = array<i32: 1>} : vector<1x128xi32>
    %c32_i32 = arith.constant 32 : i32
    %9 = vector.broadcast %c32_i32 : i32 to vector<1x128xi32>
    %10 = arith.cmpi slt, %8, %9 : vector<1x128xi32>
    %cst_3 = arith.constant 0.000000e+00 : f32
    %11 = vector.shape_cast %10 : vector<1x128xi1> to vector<1x128xi1>
    %12 = vector.broadcast %11 : vector<1x128xi1> to vector<8x128xi1>
    %13 = vector.broadcast %cst_3 : f32 to vector<8x128xf32>
    %14 = arith.select %12, %7, %13 : vector<8x128xi1>, vector<8x128xf32>
    %15 = arith.mulf %14, %14 : vector<8x128xf32>
    %cst_4 = arith.constant dense<0.000000e+00> : vector<8xf32>
    %16 = vector.multi_reduction <add>, %15, %cst_4 [1] : vector<8x128xf32> to vector<8xf32>
    %17 = vector.shape_cast %16 : vector<8xf32> to vector<8x1xf32>
    %cst_5 = arith.constant 3.125000e-02 : f32
    %18 = vector.broadcast %cst_5 : f32 to vector<8x1xf32>
    %19 = arith.mulf %17, %18 : vector<8x1xf32>
    %cst_6 = arith.constant 9.99999974E-6 : f32
    %20 = vector.broadcast %cst_6 : f32 to vector<8x1xf32>
    %21 = arith.addf %19, %20 : vector<8x1xf32>
    %22 = math.rsqrt %21 : vector<8x1xf32>
    %23 = vector.broadcast %22 : vector<8x1xf32> to vector<8x128xf32>
    %24 = arith.mulf %14, %23 : vector<8x128xf32>
    %c0_7 = arith.constant 0 : index
    %c0_8 = arith.constant 0 : index
    %25 = vector.load %arg2[%c0_7, %c0_8] : memref<1x128xf32, #tpu.memory_space<vmem>>, vector<1x128xf32>
    %26 = vector.broadcast %25 : vector<1x128xf32> to vector<8x128xf32>
    %27 = arith.mulf %24, %26 : vector<8x128xf32>
    %c0_9 = arith.constant 0 : index
    %c0_10 = arith.constant 0 : index
    %28 = vector.load %arg3[%c0_9, %c0_10] : memref<1x128xf32, #tpu.memory_space<vmem>>, vector<1x128xf32>
    %29 = vector.broadcast %28 : vector<1x128xf32> to vector<8x128xf32>
    %30 = arith.addf %27, %29 : vector<8x128xf32>
    %31 = tpu.iota {dimensions = array<i32: 1>} : vector<1x8x128xi32>
    %32 = vector.shape_cast %31 : vector<1x8x128xi32> to vector<8x128xi32>
    %c1_i32 = arith.constant 1 : i32
    %33 = vector.broadcast %c1_i32 : i32 to vector<8x128xi32>
    %34 = arith.cmpi sge, %32, %33 : vector<8x128xi32>
    %c6_i32 = arith.constant 6 : i32
    %35 = vector.broadcast %c6_i32 : i32 to vector<8x128xi32>
    %36 = arith.cmpi sle, %32, %35 : vector<8x128xi32>
    %37 = vector.extract_strided_slice %30 {offsets = [7, 0], sizes = [1, 128], strides = [1, 1]} : vector<8x128xf32> to vector<1x128xf32>
    %38 = vector.extract_strided_slice %30 {offsets = [0, 0], sizes = [7, 128], strides = [1, 1]} : vector<8x128xf32> to vector<7x128xf32>
    %39 = tpu.concatenate %37, %38 in 0 : vector<1x128xf32>, vector<7x128xf32> -> vector<8x128xf32>
    %cst_11 = arith.constant 0.000000e+00 : f32
    %40 = vector.broadcast %cst_11 : f32 to vector<8x128xf32>
    %41 = arith.select %34, %39, %40 : vector<8x128xi1>, vector<8x128xf32>
    %42 = vector.extract_strided_slice %30 {offsets = [1, 0], sizes = [7, 128], strides = [1, 1]} : vector<8x128xf32> to vector<7x128xf32>
    %43 = vector.extract_strided_slice %30 {offsets = [0, 0], sizes = [1, 128], strides = [1, 1]} : vector<8x128xf32> to vector<1x128xf32>
    %44 = tpu.concatenate %42, %43 in 0 : vector<7x128xf32>, vector<1x128xf32> -> vector<8x128xf32>
    %cst_12 = arith.constant 0.000000e+00 : f32
    %45 = vector.broadcast %cst_12 : f32 to vector<8x128xf32>
    %46 = arith.select %36, %44, %45 : vector<8x128xi1>, vector<8x128xf32>
    %c1 = arith.constant 1 : index
    %c0_13 = arith.constant 0 : index
    %c0_14 = arith.constant 0 : index
    %47 = vector.load %arg4[%c1, %c0_13, %c0_14] : memref<3x128x128xf32, #tpu.memory_space<vmem>>, vector<1x128x128xf32>
    %48 = vector.shape_cast %47 : vector<1x128x128xf32> to vector<128x128xf32>
    %cst_15 = arith.constant dense<0.000000e+00> : vector<8x128xf32>
    %49 = tpu.matmul %30, %48, %cst_15 {dimension_numbers = #tpu.dot_dimension_numbers<[1], [0], [0], [1], [0, 0, 1, 1], [], []>} : vector<8x128xf32>, vector<128x128xf32>, vector<8x128xf32> -> vector<8x128xf32>
    %c0_16 = arith.constant 0 : index
    %c0_17 = arith.constant 0 : index
    %c0_18 = arith.constant 0 : index
    %50 = vector.load %arg4[%c0_16, %c0_17, %c0_18] : memref<3x128x128xf32, #tpu.memory_space<vmem>>, vector<1x128x128xf32>
    %51 = vector.shape_cast %50 : vector<1x128x128xf32> to vector<128x128xf32>
    %cst_19 = arith.constant dense<0.000000e+00> : vector<8x128xf32>
    %52 = tpu.matmul %41, %51, %cst_19 {dimension_numbers = #tpu.dot_dimension_numbers<[1], [0], [0], [1], [0, 0, 1, 1], [], []>} : vector<8x128xf32>, vector<128x128xf32>, vector<8x128xf32> -> vector<8x128xf32>
    %53 = arith.addf %49, %52 : vector<8x128xf32>
    %c2 = arith.constant 2 : index
    %c0_20 = arith.constant 0 : index
    %c0_21 = arith.constant 0 : index
    %54 = vector.load %arg4[%c2, %c0_20, %c0_21] : memref<3x128x128xf32, #tpu.memory_space<vmem>>, vector<1x128x128xf32>
    %55 = vector.shape_cast %54 : vector<1x128x128xf32> to vector<128x128xf32>
    %cst_22 = arith.constant dense<0.000000e+00> : vector<8x128xf32>
    %56 = tpu.matmul %46, %55, %cst_22 {dimension_numbers = #tpu.dot_dimension_numbers<[1], [0], [0], [1], [0, 0, 1, 1], [], []>} : vector<8x128xf32>, vector<128x128xf32>, vector<8x128xf32> -> vector<8x128xf32>
    %57 = arith.addf %53, %56 : vector<8x128xf32>
    %c0_23 = arith.constant 0 : index
    %c0_24 = arith.constant 0 : index
    %58 = vector.load %arg5[%c0_23, %c0_24] : memref<1x128xf32, #tpu.memory_space<vmem>>, vector<1x128xf32>
    %59 = vector.broadcast %58 : vector<1x128xf32> to vector<8x128xf32>
    %60 = arith.addf %57, %59 : vector<8x128xf32>
    %61 = arith.negf %60 : vector<8x128xf32>
    %62 = math.exp %61 : vector<8x128xf32>
    %cst_25 = arith.constant 1.000000e+00 : f32
    %63 = vector.broadcast %cst_25 : f32 to vector<8x128xf32>
    %64 = arith.addf %63, %62 : vector<8x128xf32>
    %65 = arith.divf %63, %64 : vector<8x128xf32>
    %66 = arith.mulf %60, %65 : vector<8x128xf32>
    %67 = vector.extract_strided_slice %66 {offsets = [7, 0], sizes = [1, 128], strides = [1, 1]} : vector<8x128xf32> to vector<1x128xf32>
    %68 = vector.extract_strided_slice %66 {offsets = [0, 0], sizes = [7, 128], strides = [1, 1]} : vector<8x128xf32> to vector<7x128xf32>
    %69 = tpu.concatenate %67, %68 in 0 : vector<1x128xf32>, vector<7x128xf32> -> vector<8x128xf32>
    %cst_26 = arith.constant 0.000000e+00 : f32
    %70 = vector.broadcast %cst_26 : f32 to vector<8x128xf32>
    %71 = arith.select %34, %69, %70 : vector<8x128xi1>, vector<8x128xf32>
    %72 = vector.extract_strided_slice %66 {offsets = [1, 0], sizes = [7, 128], strides = [1, 1]} : vector<8x128xf32> to vector<7x128xf32>
    %73 = vector.extract_strided_slice %66 {offsets = [0, 0], sizes = [1, 128], strides = [1, 1]} : vector<8x128xf32> to vector<1x128xf32>
    %74 = tpu.concatenate %72, %73 in 0 : vector<7x128xf32>, vector<1x128xf32> -> vector<8x128xf32>
    %cst_27 = arith.constant 0.000000e+00 : f32
    %75 = vector.broadcast %cst_27 : f32 to vector<8x128xf32>
    %76 = arith.select %36, %74, %75 : vector<8x128xi1>, vector<8x128xf32>
    %c1_28 = arith.constant 1 : index
    %c0_29 = arith.constant 0 : index
    %c0_30 = arith.constant 0 : index
    %77 = vector.load %arg6[%c1_28, %c0_29, %c0_30] : memref<3x128x128xf32, #tpu.memory_space<vmem>>, vector<1x128x128xf32>
    %78 = vector.shape_cast %77 : vector<1x128x128xf32> to vector<128x128xf32>
    %cst_31 = arith.constant dense<0.000000e+00> : vector<8x128xf32>
    %79 = tpu.matmul %66, %78, %cst_31 {dimension_numbers = #tpu.dot_dimension_numbers<[1], [0], [0], [1], [0, 0, 1, 1], [], []>} : vector<8x128xf32>, vector<128x128xf32>, vector<8x128xf32> -> vector<8x128xf32>
    %c0_32 = arith.constant 0 : index
    %c0_33 = arith.constant 0 : index
    %c0_34 = arith.constant 0 : index
    %80 = vector.load %arg6[%c0_32, %c0_33, %c0_34] : memref<3x128x128xf32, #tpu.memory_space<vmem>>, vector<1x128x128xf32>
    %81 = vector.shape_cast %80 : vector<1x128x128xf32> to vector<128x128xf32>
    %cst_35 = arith.constant dense<0.000000e+00> : vector<8x128xf32>
    %82 = tpu.matmul %71, %81, %cst_35 {dimension_numbers = #tpu.dot_dimension_numbers<[1], [0], [0], [1], [0, 0, 1, 1], [], []>} : vector<8x128xf32>, vector<128x128xf32>, vector<8x128xf32> -> vector<8x128xf32>
    %83 = arith.addf %79, %82 : vector<8x128xf32>
    %c2_36 = arith.constant 2 : index
    %c0_37 = arith.constant 0 : index
    %c0_38 = arith.constant 0 : index
    %84 = vector.load %arg6[%c2_36, %c0_37, %c0_38] : memref<3x128x128xf32, #tpu.memory_space<vmem>>, vector<1x128x128xf32>
    %85 = vector.shape_cast %84 : vector<1x128x128xf32> to vector<128x128xf32>
    %cst_39 = arith.constant dense<0.000000e+00> : vector<8x128xf32>
    %86 = tpu.matmul %76, %85, %cst_39 {dimension_numbers = #tpu.dot_dimension_numbers<[1], [0], [0], [1], [0, 0, 1, 1], [], []>} : vector<8x128xf32>, vector<128x128xf32>, vector<8x128xf32> -> vector<8x128xf32>
    %87 = arith.addf %83, %86 : vector<8x128xf32>
    %c0_40 = arith.constant 0 : index
    %c0_41 = arith.constant 0 : index
    %88 = vector.load %arg7[%c0_40, %c0_41] : memref<1x128xf32, #tpu.memory_space<vmem>>, vector<1x128xf32>
    %89 = vector.broadcast %88 : vector<1x128xf32> to vector<8x128xf32>
    %90 = arith.addf %87, %89 : vector<8x128xf32>
    %91 = arith.negf %90 : vector<8x128xf32>
    %92 = math.exp %91 : vector<8x128xf32>
    %cst_42 = arith.constant 1.000000e+00 : f32
    %93 = vector.broadcast %cst_42 : f32 to vector<8x128xf32>
    %94 = arith.addf %93, %92 : vector<8x128xf32>
    %95 = arith.divf %93, %94 : vector<8x128xf32>
    %96 = arith.mulf %90, %95 : vector<8x128xf32>
    %c0_43 = arith.constant 0 : index
    %c0_44 = arith.constant 0 : index
    %97 = vector.load %arg8[%c0_43, %c0_44] : memref<128x128xf32, #tpu.memory_space<vmem>>, vector<128x128xf32>
    %cst_45 = arith.constant dense<0.000000e+00> : vector<8x128xf32>
    %98 = tpu.matmul %96, %97, %cst_45 {dimension_numbers = #tpu.dot_dimension_numbers<[1], [0], [0], [1], [0, 0, 1, 1], [], []>} : vector<8x128xf32>, vector<128x128xf32>, vector<8x128xf32> -> vector<8x128xf32>
    %c0_46 = arith.constant 0 : index
    %c0_47 = arith.constant 0 : index
    %99 = vector.load %arg9[%c0_46, %c0_47] : memref<1x128xf32, #tpu.memory_space<vmem>>, vector<1x128xf32>
    %100 = vector.broadcast %99 : vector<1x128xf32> to vector<8x128xf32>
    %101 = arith.addf %98, %100 : vector<8x128xf32>
    %102 = vector.shape_cast %101 : vector<8x128xf32> to vector<1x8x128xf32>
    %c0_48 = arith.constant 0 : index
    %c0_49 = arith.constant 0 : index
    %c0_50 = arith.constant 0 : index
    %103 = vector.load %arg10[%c0_48, %c0_49, %c0_50] : memref<1x8x128xf32, #tpu.memory_space<vmem>>, vector<1x8x128xf32>
    tpu.vector_store %arg10[%c0_48, %c0_49, %c0_50], %102 {strides = array<i32>} : memref<1x8x128xf32, #tpu.memory_space<vmem>>, vector<1x8x128xf32>,
    return
  }
  func.func @transform_0(%arg0: i32) -> (i32, i32, i32) {
    %c0_i32 = arith.constant 0 : i32
    %c0_i32_0 = arith.constant 0 : i32
    %c0_i32_1 = arith.constant 0 : i32
    return %arg0, %c0_i32, %c0_i32_0 : i32, i32, i32
  }
  func.func @transform_1(%arg0: i32) -> (i32, i32) {
    %c0_i32 = arith.constant 0 : i32
    %c0_i32_0 = arith.constant 0 : i32
    %c0_i32_1 = arith.constant 0 : i32
    return %c0_i32, %c0_i32_0 : i32, i32
  }
  func.func @transform_2(%arg0: i32) -> (i32, i32) {
    %c0_i32 = arith.constant 0 : i32
    %c0_i32_0 = arith.constant 0 : i32
    %c0_i32_1 = arith.constant 0 : i32
    return %c0_i32, %c0_i32_0 : i32, i32
  }
  func.func @transform_3(%arg0: i32) -> (i32, i32, i32) {
    %c0_i32 = arith.constant 0 : i32
    %c0_i32_0 = arith.constant 0 : i32
    %c0_i32_1 = arith.constant 0 : i32
    %c0_i32_2 = arith.constant 0 : i32
    return %c0_i32, %c0_i32_0, %c0_i32_1 : i32, i32, i32
  }
  func.func @transform_4(%arg0: i32) -> (i32, i32) {
    %c0_i32 = arith.constant 0 : i32
    %c0_i32_0 = arith.constant 0 : i32
    %c0_i32_1 = arith.constant 0 : i32
    return %c0_i32, %c0_i32_0 : i32, i32
  }
  func.func @transform_5(%arg0: i32) -> (i32, i32, i32) {
    %c0_i32 = arith.constant 0 : i32
    %c0_i32_0 = arith.constant 0 : i32
    %c0_i32_1 = arith.constant 0 : i32
    %c0_i32_2 = arith.constant 0 : i32
    return %c0_i32, %c0_i32_0, %c0_i32_1 : i32, i32, i32
  }
  func.func @transform_6(%arg0: i32) -> (i32, i32) {
    %c0_i32 = arith.constant 0 : i32
    %c0_i32_0 = arith.constant 0 : i32
    %c0_i32_1 = arith.constant 0 : i32
    return %c0_i32, %c0_i32_0 : i32, i32
  }
  func.func @transform_7(%arg0: i32) -> (i32, i32) {
    %c0_i32 = arith.constant 0 : i32
    %c0_i32_0 = arith.constant 0 : i32
    %c0_i32_1 = arith.constant 0 : i32
    return %c0_i32, %c0_i32_0 : i32, i32
  }
  func.func @transform_8(%arg0: i32) -> (i32, i32) {
    %c0_i32 = arith.constant 0 : i32
    %c0_i32_0 = arith.constant 0 : i32
    %c0_i32_1 = arith.constant 0 : i32
    return %c0_i32, %c0_i32_0 : i32, i32
  }
  func.func @transform_9(%arg0: i32) -> (i32, i32, i32) {
    %c0_i32 = arith.constant 0 : i32
    %c0_i32_0 = arith.constant 0 : i32
    %c0_i32_1 = arith.constant 0 : i32
    return %arg0, %c0_i32, %c0_i32_0 : i32, i32, i32
  }
}

</mosaic_0001>

<llo_original>
// kernel: tpu_custom_call.1
$region0: #{tpu_custom_call.1}
  #allocation0 [shape = 'u32[]', space=smem, size = 0x4, offset = 0x4, fixed_abs, tag = 'smem constant byte address 0x4 - core index']
  #allocation1 [shape = 'u32[72,128]{1,0:T(1,128)}', space=vmem, size = 0x9000, scoped, tag = 'internal scratch']
  %s0 = inlined_call_operand.hbm [shape: f32[2,8,128], index: 0, kind: input, shape index: {}]
  %s1 = inlined_call_operand.hbm [shape: f32[1,128], index: 1, kind: input, shape index: {}]
  %s2 = inlined_call_operand.vmem [shape: f32[1,128], index: 2, kind: input, shape index: {}]
  %s3 = inlined_call_operand.hbm [shape: f32[3,128,128], index: 3, kind: input, shape index: {}]
  %s4 = inlined_call_operand.vmem [shape: f32[1,128], index: 4, kind: input, shape index: {}]
  %s5 = inlined_call_operand.hbm [shape: f32[3,128,128], index: 5, kind: input, shape index: {}]
  %s6 = inlined_call_operand.vmem [shape: f32[1,128], index: 6, kind: input, shape index: {}]
  %s7 = inlined_call_operand.hbm [shape: f32[128,128], index: 7, kind: input, shape index: {}]
  %s8 = inlined_call_operand.vmem [shape: f32[1,128], index: 8, kind: input, shape index: {}]
  %s9 = inlined_call_operand.hbm [shape: f32[2,8,128], index: 9, kind: output, shape index: {}]
  %s10 = sld [smem:[#allocation0]]
  $region89: #{tpu_custom_call.1} parent=0
    _
  %s12 = ssub.s32 1, %s10
  %s13 = scalar_select 0, %s12, %s10
  $region1: #{tpu_custom_call.1} parent=0
    #allocation2 [shape = 'u8[8192]{0}', space=vmem, size = 0x2000, scoped, tag = 'input window, operand 0']
    #allocation3 [shape = 's32[2]{0}', space=sflag, size = 0x8, scoped, tag = 'scoped memory for tpu_custom_call.1']
    #allocation4 [shape = 's32[2]{0}', space=sflag, size = 0x8, scoped, tag = 'scoped memory for tpu_custom_call.1']
    #allocation5 [shape = 'u8[512]{0}', space=vmem, size = 0x400, scoped, tag = 'input window, operand 1, single buffered']
    #allocation6 [shape = 's32[1]{0}', space=sflag, size = 0x4, scoped, tag = 'scoped memory for tpu_custom_call.1']
    #allocation7 [shape = 'u8[196608]{0}', space=vmem, size = 0x30000, scoped, tag = 'input window, operand 3, single buffered']
    #allocation8 [shape = 'u8[196608]{0}', space=vmem, size = 0x30000, scoped, tag = 'input window, operand 5, single buffered']
    #allocation9 [shape = 's32[1]{0}', space=sflag, size = 0x4, scoped, tag = 'scoped memory for tpu_custom_call.1']
    #allocation10 [shape = 'u8[65536]{0}', space=vmem, size = 0x10000, scoped, tag = 'input window, operand 7, single buffered']
    #allocation11 [shape = 'u8[8192]{0}', space=vmem, size = 0x2000, scoped, tag = 'output window, operand 0']
    %14 = vsyncpa [#allocation3], 0
    %s15 = scalar_lea.sflag [#allocation3], 1
    %16 = vsyncpa %s15, 0
    %17 = vsyncpa [#allocation6], 0
    %18 = vsyncpa [#allocation9], 0
    %19 = vsyncpa [#allocation4], 0
    %s20 = scalar_lea.sflag [#allocation4], 1
    %21 = vsyncpa %s20, 0
    loop: start=0, step=1, limit=4
    $region2: #{tpu_custom_call.1} parent=1 // loop_pre_header
      _
    $region3: #{tpu_custom_call.1} parent=1 // loop_header
      %s23 = sphi 0, %s27
      %p24 = scmp.ge.s32.totalorder %s23, 4
      %s33 = sphi 0, %s35
      %s36 = sphi 0, %s33
      %s37 = sphi 0, %s36
      %s53 = sphi 0, %s37
      %s57 = sphi 0, %s57
      %s59 = sphi 0, %s57
      %s60 = sphi 0, %s59
      %s74 = sphi 0, %s60
      %s78 = sphi 0, %s78
      %s80 = sphi 0, %s78
      %s81 = sphi 0, %s80
      %s95 = sphi 0, %s81
      %s99 = sphi 0, %s99
      %s101 = sphi 0, %s99
      %s102 = sphi 0, %s101
      %s116 = sphi 0, %s102
      %s120 = sphi 0, %s120
      %s122 = sphi 0, %s120
      %s123 = sphi 0, %s122
      %s137 = sphi 0, %s123
      %s141 = sphi 0, %s141
      %s143 = sphi 0, %s141
      %s144 = sphi 0, %s143
      %s158 = sphi 0, %s144
      %s162 = sphi 0, %s162
      %s164 = sphi 0, %s162
      %s165 = sphi 0, %s164
      %s179 = sphi 0, %s165
      %s183 = sphi 0, %s183
      %s185 = sphi 0, %s183
      %s186 = sphi 0, %s185
      %s200 = sphi 0, %s186
      %s204 = sphi 0, %s204
      %s206 = sphi 0, %s204
      %s207 = sphi 0, %s206
      %s221 = sphi 0, %s207
      %s227 = sphi 0, %s229
      %s230 = sphi 0, %s227
      %s231 = sphi 0, %s230
      %s247 = sphi 0, %s231
    $region4: #{tpu_custom_call.1} parent=1 // loop_header_branch
      %26 = sbr.rel (%p24) target = $region8
    $region5: #{tpu_custom_call.1} parent=1 // loop_body
      %s28 = ssub.s32 %s23, 1
      %s29 = ssub.s32 %s23, 2
      %s30 = sadd.s32 %s23, 1
      %s31 = ssub.s32 %s23, %s30
      %p32 = scmp.eq.s32.totalorder %s31, 0
      %s34 = sadd.s32 %s33, 1
      %s35 = scalar_select %p32, %s33, %s34
      %p38 = pneg %p32
      %p39 = scmp.eq.s32.totalorder %s23, 1
      %p40 = por %p38, %p39
      %p41 = scmp.ne.s32.totalorder %s33, %s36
      %p42 = scmp.eq.s32.totalorder %s23, 0
      %p43 = por %p41, %p42
      %p44 = scmp.ne.s32.totalorder %s33, %s36
      %p45 = scmp.eq.s32.totalorder %s28, 1
      %p46 = por %p44, %p45
      %p47 = scmp.ne.s32.totalorder %s36, %s37
      %p48 = scmp.eq.s32.totalorder %s28, 0
      %p49 = por %p47, %p48
      %p50 = scmp.ne.s32.totalorder %s36, %s37
      %p51 = scmp.eq.s32.totalorder %s29, 1
      %p52 = por %p50, %p51
      %p54 = scmp.ne.s32.totalorder %s37, %s53
      %p55 = scmp.eq.s32.totalorder %s29, 0
      %p56 = por %p54, %p55
      %s58 = sadd.s32 %s57, 1
      %p61 = scmp.eq.s32.totalorder %s23, 1
      %p62 = scmp.ne.s32.totalorder %s57, %s59
      %p63 = scmp.eq.s32.totalorder %s23, 0
      %p64 = por %p62, %p63
      %p65 = scmp.ne.s32.totalorder %s57, %s59
      %p66 = scmp.eq.s32.totalorder %s28, 1
      %p67 = por %p65, %p66
      %p68 = scmp.ne.s32.totalorder %s59, %s60
      %p69 = scmp.eq.s32.totalorder %s28, 0
      %p70 = por %p68, %p69
      %p71 = scmp.ne.s32.totalorder %s59, %s60
      %p72 = scmp.eq.s32.totalorder %s29, 1
      %p73 = por %p71, %p72
      %p75 = scmp.ne.s32.totalorder %s60, %s74
      %p76 = scmp.eq.s32.totalorder %s29, 0
      %p77 = por %p75, %p76
      %s79 = sadd.s32 %s78, 1
      %p82 = scmp.eq.s32.totalorder %s23, 1
      %p83 = scmp.ne.s32.totalorder %s78, %s80
      %p84 = scmp.eq.s32.totalorder %s23, 0
      %p85 = por %p83, %p84
      %p86 = scmp.ne.s32.totalorder %s78, %s80
      %p87 = scmp.eq.s32.totalorder %s28, 1
      %p88 = por %p86, %p87
      %p89 = scmp.ne.s32.totalorder %s80, %s81
      %p90 = scmp.eq.s32.totalorder %s28, 0
      %p91 = por %p89, %p90
      %p92 = scmp.ne.s32.totalorder %s80, %s81
      %p93 = scmp.eq.s32.totalorder %s29, 1
      %p94 = por %p92, %p93
      %p96 = scmp.ne.s32.totalorder %s81, %s95
      %p97 = scmp.eq.s32.totalorder %s29, 0
      %p98 = por %p96, %p97
      %s100 = sadd.s32 %s99, 1
      %p103 = scmp.eq.s32.totalorder %s23, 1
      %p104 = scmp.ne.s32.totalorder %s99, %s101
      %p105 = scmp.eq.s32.totalorder %s23, 0
      %p106 = por %p104, %p105
      %p107 = scmp.ne.s32.totalorder %s99, %s101
      %p108 = scmp.eq.s32.totalorder %s28, 1
      %p109 = por %p107, %p108
      %p110 = scmp.ne.s32.totalorder %s101, %s102
      %p111 = scmp.eq.s32.totalorder %s28, 0
      %p112 = por %p110, %p111
      %p113 = scmp.ne.s32.totalorder %s101, %s102
      %p114 = scmp.eq.s32.totalorder %s29, 1
      %p115 = por %p113, %p114
      %p117 = scmp.ne.s32.totalorder %s102, %s116
      %p118 = scmp.eq.s32.totalorder %s29, 0
      %p119 = por %p117, %p118
      %s121 = sadd.s32 %s120, 1
      %p124 = scmp.eq.s32.totalorder %s23, 1
      %p125 = scmp.ne.s32.totalorder %s120, %s122
      %p126 = scmp.eq.s32.totalorder %s23, 0
      %p127 = por %p125, %p126
      %p128 = scmp.ne.s32.totalorder %s120, %s122
      %p129 = scmp.eq.s32.totalorder %s28, 1
      %p130 = por %p128, %p129
      %p131 = scmp.ne.s32.totalorder %s122, %s123
      %p132 = scmp.eq.s32.totalorder %s28, 0
      %p133 = por %p131, %p132
      %p134 = scmp.ne.s32.totalorder %s122, %s123
      %p135 = scmp.eq.s32.totalorder %s29, 1
      %p136 = por %p134, %p135
      %p138 = scmp.ne.s32.totalorder %s123, %s137
      %p139 = scmp.eq.s32.totalorder %s29, 0
      %p140 = por %p138, %p139
      %s142 = sadd.s32 %s141, 1
      %p145 = scmp.eq.s32.totalorder %s23, 1
      %p146 = scmp.ne.s32.totalorder %s141, %s143
      %p147 = scmp.eq.s32.totalorder %s23, 0
      %p148 = por %p146, %p147
      %p149 = scmp.ne.s32.totalorder %s141, %s143
      %p150 = scmp.eq.s32.totalorder %s28, 1
      %p151 = por %p149, %p150
      %p152 = scmp.ne.s32.totalorder %s143, %s144
      %p153 = scmp.eq.s32.totalorder %s28, 0
      %p154 = por %p152, %p153
      %p155 = scmp.ne.s32.totalorder %s143, %s144
      %p156 = scmp.eq.s32.totalorder %s29, 1
      %p157 = por %p155, %p156
      %p159 = scmp.ne.s32.totalorder %s144, %s158
      %p160 = scmp.eq.s32.totalorder %s29, 0
      %p161 = por %p159, %p160
      %s163 = sadd.s32 %s162, 1
      %p166 = scmp.eq.s32.totalorder %s23, 1
      %p167 = scmp.ne.s32.totalorder %s162, %s164
      %p168 = scmp.eq.s32.totalorder %s23, 0
      %p169 = por %p167, %p168
      %p170 = scmp.ne.s32.totalorder %s162, %s164
      %p171 = scmp.eq.s32.totalorder %s28, 1
      %p172 = por %p170, %p171
      %p173 = scmp.ne.s32.totalorder %s164, %s165
      %p174 = scmp.eq.s32.totalorder %s28, 0
      %p175 = por %p173, %p174
      %p176 = scmp.ne.s32.totalorder %s164, %s165
      %p177 = scmp.eq.s32.totalorder %s29, 1
      %p178 = por %p176, %p177
      %p180 = scmp.ne.s32.totalorder %s165, %s179
      %p181 = scmp.eq.s32.totalorder %s29, 0
      %p182 = por %p180, %p181
      %s184 = sadd.s32 %s183, 1
      %p187 = scmp.eq.s32.totalorder %s23, 1
      %p188 = scmp.ne.s32.totalorder %s183, %s185
      %p189 = scmp.eq.s32.totalorder %s23, 0
      %p190 = por %p188, %p189
      %p191 = scmp.ne.s32.totalorder %s183, %s185
      %p192 = scmp.eq.s32.totalorder %s28, 1
      %p193 = por %p191, %p192
      %p194 = scmp.ne.s32.totalorder %s185, %s186
      %p195 = scmp.eq.s32.totalorder %s28, 0
      %p196 = por %p194, %p195
      %p197 = scmp.ne.s32.totalorder %s185, %s186
      %p198 = scmp.eq.s32.totalorder %s29, 1
      %p199 = por %p197, %p198
      %p201 = scmp.ne.s32.totalorder %s186, %s200
      %p202 = scmp.eq.s32.totalorder %s29, 0
      %p203 = por %p201, %p202
      %s205 = sadd.s32 %s204, 1
      %p208 = scmp.eq.s32.totalorder %s23, 1
      %p209 = scmp.ne.s32.totalorder %s204, %s206
      %p210 = scmp.eq.s32.totalorder %s23, 0
      %p211 = por %p209, %p210
      %p212 = scmp.ne.s32.totalorder %s204, %s206
      %p213 = scmp.eq.s32.totalorder %s28, 1
      %p214 = por %p212, %p213
      %p215 = scmp.ne.s32.totalorder %s206, %s207
      %p216 = scmp.eq.s32.totalorder %s28, 0
      %p217 = por %p215, %p216
      %p218 = scmp.ne.s32.totalorder %s206, %s207
      %p219 = scmp.eq.s32.totalorder %s29, 1
      %p220 = por %p218, %p219
      %p222 = scmp.ne.s32.totalorder %s207, %s221
      %p223 = scmp.eq.s32.totalorder %s29, 0
      %p224 = por %p222, %p223
      %s225 = ssub.s32 %s23, %s30
      %p226 = scmp.eq.s32.totalorder %s225, 0
      %s228 = sadd.s32 %s227, 1
      %s229 = scalar_select %p226, %s227, %s228
      %p232 = pneg %p226
      %p233 = scmp.eq.s32.totalorder %s23, 1
      %p234 = por %p232, %p233
      %p235 = scmp.ne.s32.totalorder %s227, %s230
      %p236 = scmp.eq.s32.totalorder %s23, 0
      %p237 = por %p235, %p236
      %p238 = scmp.ne.s32.totalorder %s227, %s230
      %p239 = scmp.eq.s32.totalorder %s28, 1
      %p240 = por %p238, %p239
      %p241 = scmp.ne.s32.totalorder %s230, %s231
      %p242 = scmp.eq.s32.totalorder %s28, 0
      %p243 = por %p241, %p242
      %p244 = scmp.ne.s32.totalorder %s230, %s231
      %p245 = scmp.eq.s32.totalorder %s29, 1
      %p246 = por %p244, %p245
      %p248 = scmp.ne.s32.totalorder %s231, %s247
      %p249 = scmp.eq.s32.totalorder %s29, 0
      %p250 = por %p248, %p249
      %p251 = scmp.le.s32.totalorder 1, %s23
      %p252 = scmp.lt.s32.totalorder %s23, 3
      %p253 = pnand %p251, %p252
      %p254 = pneg %p253
      // Predicated region
      $region9: #{tpu_custom_call.1} parent=5 // pred_check
        _
      $region10: #{tpu_custom_call.1} parent=5 // pred_check_branch
        %256 = sbr.rel (%p253) target = $region12
      $region11: #{tpu_custom_call.1} parent=5 // pred_region
        %s257 = ssub.s32 %s23, 1
        // Predicated region
        $region13: #{tpu_custom_call.1} parent=11 // pred_check
          %p258 = pneg %p70
        $region14: #{tpu_custom_call.1} parent=11 // pred_check_branch
          %260 = sbr.rel (%p258) target = $region16
        $region15: #{tpu_custom_call.1} parent=11 // pred_region
          %262 = vsyncadd [#allocation6], 0
          %s264 = sshll.u32 %s1, 4
          %s265 = int_to_ptr.hbm [resolvable:$true] %s264
          %s266 = sshll.u32 [#allocation5], 4
          %s267 = int_to_ptr.vmem [resolvable:$true] %s266
          %269 = dma.hbm_to_vmem [thread:$0]  %s265, 16, %s267, [#allocation6]
        $region16: #{tpu_custom_call.1} parent=11 // pred_fallthru
          _
        // Predicated region
        $region17: #{tpu_custom_call.1} parent=11 // pred_check
          %p270 = pneg %p91
        $region18: #{tpu_custom_call.1} parent=11 // pred_check_branch
          %272 = sbr.rel (%p270) target = $region20
        $region19: #{tpu_custom_call.1} parent=11 // pred_region
          _
        $region20: #{tpu_custom_call.1} parent=11 // pred_fallthru
          _
        // Predicated region
        $region21: #{tpu_custom_call.1} parent=11 // pred_check
          %p273 = pneg %p112
        $region22: #{tpu_custom_call.1} parent=11 // pred_check_branch
          %275 = sbr.rel (%p273) target = $region24
        $region23: #{tpu_custom_call.1} parent=11 // pred_region
          %277 = vsyncadd [#allocation6], 0
          %s278 = sshll.u32 %s3, 4
          %s279 = int_to_ptr.hbm [resolvable:$true] %s278
          %s280 = sshll.u32 [#allocation7], 4
          %s281 = int_to_ptr.vmem [resolvable:$true] %s280
          %286 = dma.hbm_to_vmem [thread:$0]  %s279, 6144, %s281, [#allocation6], 128, 128, 8
        $region24: #{tpu_custom_call.1} parent=11 // pred_fallthru
          _
        // Predicated region
        $region25: #{tpu_custom_call.1} parent=11 // pred_check
          %p287 = pneg %p133
        $region26: #{tpu_custom_call.1} parent=11 // pred_check_branch
          %289 = sbr.rel (%p287) target = $region28
        $region27: #{tpu_custom_call.1} parent=11 // pred_region
          _
        $region28: #{tpu_custom_call.1} parent=11 // pred_fallthru
          _
        // Predicated region
        $region29: #{tpu_custom_call.1} parent=11 // pred_check
          %p290 = pneg %p154
        $region30: #{tpu_custom_call.1} parent=11 // pred_check_branch
          %292 = sbr.rel (%p290) target = $region32
        $region31: #{tpu_custom_call.1} parent=11 // pred_region
          %294 = vsyncadd [#allocation9], 0
          %s295 = sshll.u32 %s5, 4
          %s296 = int_to_ptr.hbm [resolvable:$true] %s295
          %s297 = sshll.u32 [#allocation8], 4
          %s298 = int_to_ptr.vmem [resolvable:$true] %s297
          %303 = dma.hbm_to_vmem [thread:$0]  %s296, 6144, %s298, [#allocation9], 128, 128, 8
        $region32: #{tpu_custom_call.1} parent=11 // pred_fallthru
          _
        // Predicated region
        $region33: #{tpu_custom_call.1} parent=11 // pred_check
          %p304 = pneg %p175
        $region34: #{tpu_custom_call.1} parent=11 // pred_check_branch
          %306 = sbr.rel (%p304) target = $region36
        $region35: #{tpu_custom_call.1} parent=11 // pred_region
          _
        $region36: #{tpu_custom_call.1} parent=11 // pred_fallthru
          _
        // Predicated region
        $region37: #{tpu_custom_call.1} parent=11 // pred_check
          %p307 = pneg %p196
        $region38: #{tpu_custom_call.1} parent=11 // pred_check_branch
          %309 = sbr.rel (%p307) target = $region40
        $region39: #{tpu_custom_call.1} parent=11 // pred_region
          %311 = vsyncadd [#allocation9], 0
          %s312 = sshll.u32 %s7, 4
          %s313 = int_to_ptr.hbm [resolvable:$true] %s312
          %s314 = sshll.u32 [#allocation10], 4
          %s315 = int_to_ptr.vmem [resolvable:$true] %s314
          %320 = dma.hbm_to_vmem [thread:$0]  %s313, 2048, %s315, [#allocation9], 128, 128, 8
        $region40: #{tpu_custom_call.1} parent=11 // pred_fallthru
          _
        // Predicated region
        $region41: #{tpu_custom_call.1} parent=11 // pred_check
          %p321 = pneg %p217
        $region42: #{tpu_custom_call.1} parent=11 // pred_check_branch
          %323 = sbr.rel (%p321) target = $region44
        $region43: #{tpu_custom_call.1} parent=11 // pred_region
          _
        $region44: #{tpu_custom_call.1} parent=11 // pred_fallthru
          _
      $region12: #{tpu_custom_call.1} parent=5 // pred_fallthru
        _
      %p324 = scmp.lt.s32.totalorder %s23, 2
      // Predicated region
      $region45: #{tpu_custom_call.1} parent=5 // pred_check
        %p325 = pneg %p324
      $region46: #{tpu_custom_call.1} parent=5 // pred_check_branch
        %327 = sbr.rel (%p325) target = $region48
      $region47: #{tpu_custom_call.1} parent=5 // pred_region
        // Predicated region
        $region49: #{tpu_custom_call.1} parent=47 // pred_check
          %p328 = pneg %p43
        $region50: #{tpu_custom_call.1} parent=47 // pred_check_branch
          %330 = sbr.rel (%p328) target = $region52
        $region51: #{tpu_custom_call.1} parent=47 // pred_region
          %s331 = sand.u32 %s33, 1
          %s332 = scalar_lea.sflag [#allocation3], %s331
          %s333 = sand.u32 %s33, 1
          %s334 = smul.addr %s333, 8
          %s335 = scalar_lea.vmem [#allocation2], %s334
          %337 = vsyncadd %s332, 0
          %s338 = smul.addr %s23, 8
          %s339 = scalar_lea.hbm %s0, %s338
          %s341 = sshll.u32 %s339, 4
          %s342 = int_to_ptr.hbm [resolvable:$true] %s341
          %s343 = sshll.u32 %s335, 4
          %s344 = int_to_ptr.vmem [resolvable:$true] %s343
          %346 = dma.hbm_to_vmem [thread:$0]  %s342, 128, %s344, %s332
        $region52: #{tpu_custom_call.1} parent=47 // pred_fallthru
          _
      $region48: #{tpu_custom_call.1} parent=5 // pred_fallthru
        _
      %p347 = scmp.le.s32.totalorder 1, %s23
      %p348 = scmp.lt.s32.totalorder %s23, 3
      %p349 = pnand %p347, %p348
      %p350 = pneg %p349
      // Predicated region
      $region53: #{tpu_custom_call.1} parent=5 // pred_check
        _
      $region54: #{tpu_custom_call.1} parent=5 // pred_check_branch
        %352 = sbr.rel (%p349) target = $region56
      $region55: #{tpu_custom_call.1} parent=5 // pred_region
        %s353 = ssub.s32 %s23, 1
        %s354 = sand.u32 %s36, 1
        %s355 = scalar_lea.sflag [#allocation3], %s354
        %s356 = sand.u32 %s36, 1
        %s357 = smul.addr %s356, 8
        %s358 = scalar_lea.vmem [#allocation2], %s357
        // Predicated region
        $region57: #{tpu_custom_call.1} parent=55 // pred_check
          %p359 = pneg %p49
        $region58: #{tpu_custom_call.1} parent=55 // pred_check_branch
          %361 = sbr.rel (%p359) target = $region60
        $region59: #{tpu_custom_call.1} parent=55 // pred_region
          %363 = dma.done %s355, 128
        $region60: #{tpu_custom_call.1} parent=55 // pred_fallthru
          _
        // Predicated region
        $region61: #{tpu_custom_call.1} parent=55 // pred_check
          %p364 = pneg %p70
        $region62: #{tpu_custom_call.1} parent=55 // pred_check_branch
          %366 = sbr.rel (%p364) target = $region64
        $region63: #{tpu_custom_call.1} parent=55 // pred_region
          %368 = dma.done [#allocation6], 16
        $region64: #{tpu_custom_call.1} parent=55 // pred_fallthru
          _
        // Predicated region
        $region65: #{tpu_custom_call.1} parent=55 // pred_check
          %p369 = pneg %p112
        $region66: #{tpu_custom_call.1} parent=55 // pred_check_branch
          %371 = sbr.rel (%p369) target = $region68
        $region67: #{tpu_custom_call.1} parent=55 // pred_region
          %373 = dma.done [#allocation6], 6144
        $region68: #{tpu_custom_call.1} parent=55 // pred_fallthru
          _
        // Predicated region
        $region69: #{tpu_custom_call.1} parent=55 // pred_check
          %p374 = pneg %p154
        $region70: #{tpu_custom_call.1} parent=55 // pred_check_branch
          %376 = sbr.rel (%p374) target = $region72
        $region71: #{tpu_custom_call.1} parent=55 // pred_region
          %378 = dma.done [#allocation9], 6144
        $region72: #{tpu_custom_call.1} parent=55 // pred_fallthru
          _
        // Predicated region
        $region73: #{tpu_custom_call.1} parent=55 // pred_check
          %p379 = pneg %p196
        $region74: #{tpu_custom_call.1} parent=55 // pred_check_branch
          %381 = sbr.rel (%p379) target = $region76
        $region75: #{tpu_custom_call.1} parent=55 // pred_region
          %383 = dma.done [#allocation9], 2048
        $region76: #{tpu_custom_call.1} parent=55 // pred_fallthru
          _
        %s384 = sand.u32 %s36, 1
        %s385 = scalar_lea.sflag [#allocation3], %s384
        %s386 = sand.u32 %s36, 1
        %s387 = smul.addr %s386, 8
        %s388 = scalar_lea.vmem [#allocation2], %s387
        %p389 = pneg %p49
        %p390 = pneg %p46
        %p391 = pneg %p70
        %p392 = pneg %p67
        %p393 = pneg %p91
        %p394 = pneg %p88
        %p395 = pneg %p112
        %p396 = pneg %p109
        %p397 = pneg %p133
        %p398 = pneg %p130
        %p399 = pneg %p154
        %p400 = pneg %p151
        %p401 = pneg %p175
        %p402 = pneg %p172
        %p403 = pneg %p196
        %p404 = pneg %p193
        %p405 = pneg %p217
        %p406 = pneg %p214
        %p407 = pneg %p243
        %p408 = pneg %p240
        %s409 = sand.u32 %s230, 1
        %s410 = scalar_lea.sflag [#allocation4], %s409
        %s411 = sand.u32 %s230, 1
        %s412 = smul.addr %s411, 8
        %s413 = scalar_lea.vmem [#allocation11], %s412
        %v414 = vld [vmem:[%s358] sm:$0xff]
        %415 = vadd.xlane.f32.xlu0 %v414
        %v416 = vpop.xlane.xlu0 %415
        %v417 = vmul.f32 %v416, 0.03125
        %v418 = vsub.f32 %v414, %v417
        %v419 = vlaneseq
        %v420 = vand.u32 %v419, 127
        %vm421 = vcmp.lt.s32.totalorder %v420, 32
        %v422 = vsel %vm421, 1, 0
        %vm423 = vcmp.eq.s32.totalorder %v422, 1
        %v424 = vsel %vm423, %v418, 0.0
        %v425 = vmul.f32 %v424, %v424
        %426 = vadd.xlane.f32.xlu0 %v425
        %v427 = vpop.xlane.xlu0 %426
        %v428 = vmul.f32 %v427, 0.03125
        %v429 = vadd.f32 %v428, 1e-05
        %v430 = vrsqrt.pop %v429
        %v431 = vmul.f32 %v430, %v429
        %v432 = vmul.f32 %v431, %v430
        %v433 = vmul.f32 0.5, %v432
        %v434 = vsub.f32 1.5, %v433
        %v435 = vmul.f32 %v430, %v434
        %vm436 = vweird.f32 %v429
        %vm437 = vweird.f32 %v430
        %vm438 = vmor %vm436, %vm437
        %v439 = vsel %vm438, %v430, %v435
        %v440 = vmul.f32 %v424, %v439
        %v441 = vld [vmem:[#allocation5] sm:$0x1]
        %v443 = vperm.slane %v441, 0
        %v445 = vmul.f32 %v440, %v443
        %v446 = vld [vmem:[%s2] sm:$0x1]
        %v448 = vperm.slane %v446, 0
        %v450 = vadd.f32 %v445, %v448
        %v451 = vlaneseq
        %v452 = vshrl.u32 %v451, 7
        %vm453 = vcmp.ge.s32.totalorder %v452, 1
        %vm454 = vcmp.le.s32.totalorder %v452, 6
        %v456 = vrot.slane %v450, 7
        %vm458 = vcmask 1040384
        %v459 = vsel %vm458, %v456, %v456
        %v460 = vsel %vm453, %v459, 0.0
        %v461 = vrot.slane %v450, 1
        %vm463 = vcmask 1046528
        %v464 = vsel %vm463, %v461, %v461
        %v465 = vsel %vm454, %v464, 0.0
        %s466 = scalar_lea.vmem [#allocation7], 128
        %v467 = vld [vmem:[%s466] sm:$0xff]
        %v468 = vld [vmem:[%s466 + $0x8] sm:$0xff]
        %v469 = vld [vmem:[%s466 + $0x10] sm:$0xff]
        %v470 = vld [vmem:[%s466 + $0x18] sm:$0xff]
        %v471 = vld [vmem:[%s466 + $0x20] sm:$0xff]
        %v472 = vld [vmem:[%s466 + $0x28] sm:$0xff]
        %v473 = vld [vmem:[%s466 + $0x30] sm:$0xff]
        %v474 = vld [vmem:[%s466 + $0x38] sm:$0xff]
        %v475 = vld [vmem:[%s466 + $0x40] sm:$0xff]
        %v476 = vld [vmem:[%s466 + $0x48] sm:$0xff]
        %v477 = vld [vmem:[%s466 + $0x50] sm:$0xff]
        %v478 = vld [vmem:[%s466 + $0x58] sm:$0xff]
        %v479 = vld [vmem:[%s466 + $0x60] sm:$0xff]
        %v480 = vld [vmem:[%s466 + $0x68] sm:$0xff]
        %v481 = vld [vmem:[%s466 + $0x70] sm:$0xff]
        %v482 = vld [vmem:[%s466 + $0x78] sm:$0xff]
        %v483 = vld [vmem:[#allocation7] sm:$0xff]
        %v484 = vld [vmem:[#allocation7 + $0x8] sm:$0xff]
        %v485 = vld [vmem:[#allocation7 + $0x10] sm:$0xff]
        %v486 = vld [vmem:[#allocation7 + $0x18] sm:$0xff]
        %v487 = vld [vmem:[#allocation7 + $0x20] sm:$0xff]
        %v488 = vld [vmem:[#allocation7 + $0x28] sm:$0xff]
        %v489 = vld [vmem:[#allocation7 + $0x30] sm:$0xff]
        %v490 = vld [vmem:[#allocation7 + $0x38] sm:$0xff]
        %v491 = vld [vmem:[#allocation7 + $0x40] sm:$0xff]
        %v492 = vld [vmem:[#allocation7 + $0x48] sm:$0xff]
        %v493 = vld [vmem:[#allocation7 + $0x50] sm:$0xff]
        %v494 = vld [vmem:[#allocation7 + $0x58] sm:$0xff]
        %v495 = vld [vmem:[#allocation7 + $0x60] sm:$0xff]
        %v496 = vld [vmem:[#allocation7 + $0x68] sm:$0xff]
        %v497 = vld [vmem:[#allocation7 + $0x70] sm:$0xff]
        %v498 = vld [vmem:[#allocation7 + $0x78] sm:$0xff]
        %499 = vmatpush.msra.mxu0 %v498
        %500 = vmatpush.msra.mxu0 %v497
        %501 = vmatpush.msra.mxu0 %v496
        %502 = vmatpush.msra.mxu0 %v495
        %503 = vmatpush.msra.mxu0 %v494
        %504 = vmatpush.msra.mxu0 %v493
        %505 = vmatpush.msra.mxu0 %v492
        %506 = vmatpush.msra.mxu0 %v491
        %507 = vmatpush.msra.mxu0 %v490
        %508 = vmatpush.msra.mxu0 %v489
        %509 = vmatpush.msra.mxu0 %v488
        %510 = vmatpush.msra.mxu0 %v487
        %511 = vmatpush.msra.mxu0 %v486
        %512 = vmatpush.msra.mxu0 %v485
        %513 = vmatpush.msra.mxu0 %v484
        %514 = vmatpush.msra.mxu0 %v483
        %515 = vmatmul.f32.gmra.mxu0 %v460
        %v516 = vpop.f32.mrf.mxu0
        %v517 = vadd.f32 0.0, %v516
        %518 = vdwg.mxu0
        %519 = vmatpush.msra.mxu0 %v482
        %520 = vmatpush.msra.mxu0 %v481
        %521 = vmatpush.msra.mxu0 %v480
        %522 = vmatpush.msra.mxu0 %v479
        %523 = vmatpush.msra.mxu0 %v478
        %524 = vmatpush.msra.mxu0 %v477
        %525 = vmatpush.msra.mxu0 %v476
        %526 = vmatpush.msra.mxu0 %v475
        %527 = vmatpush.msra.mxu0 %v474
        %528 = vmatpush.msra.mxu0 %v473
        %529 = vmatpush.msra.mxu0 %v472
        %530 = vmatpush.msra.mxu0 %v471
        %531 = vmatpush.msra.mxu0 %v470
        %532 = vmatpush.msra.mxu0 %v469
        %533 = vmatpush.msra.mxu0 %v468
        %534 = vmatpush.msra.mxu0 %v467
        %535 = vmatmul.f32.gmra.mxu0 %v450
        %v536 = vpop.f32.mrf.mxu0
        %v537 = vadd.f32 %v517, %v536
        %538 = vdwg.mxu0
        %s539 = scalar_lea.vmem [#allocation7], 256
        %v540 = vld [vmem:[%s539] sm:$0xff]
        %v541 = vld [vmem:[%s539 + $0x8] sm:$0xff]
        %v542 = vld [vmem:[%s539 + $0x10] sm:$0xff]
        %v543 = vld [vmem:[%s539 + $0x18] sm:$0xff]
        %v544 = vld [vmem:[%s539 + $0x20] sm:$0xff]
        %v545 = vld [vmem:[%s539 + $0x28] sm:$0xff]
        %v546 = vld [vmem:[%s539 + $0x30] sm:$0xff]
        %v547 = vld [vmem:[%s539 + $0x38] sm:$0xff]
        %v548 = vld [vmem:[%s539 + $0x40] sm:$0xff]
        %v549 = vld [vmem:[%s539 + $0x48] sm:$0xff]
        %v550 = vld [vmem:[%s539 + $0x50] sm:$0xff]
        %v551 = vld [vmem:[%s539 + $0x58] sm:$0xff]
        %v552 = vld [vmem:[%s539 + $0x60] sm:$0xff]
        %v553 = vld [vmem:[%s539 + $0x68] sm:$0xff]
        %v554 = vld [vmem:[%s539 + $0x70] sm:$0xff]
        %v555 = vld [vmem:[%s539 + $0x78] sm:$0xff]
        %556 = vmatpush.msra.mxu0 %v555
        %557 = vmatpush.msra.mxu0 %v554
        %558 = vmatpush.msra.mxu0 %v553
        %559 = vmatpush.msra.mxu0 %v552
        %560 = vmatpush.msra.mxu0 %v551
        %561 = vmatpush.msra.mxu0 %v550
        %562 = vmatpush.msra.mxu0 %v549
        %563 = vmatpush.msra.mxu0 %v548
        %564 = vmatpush.msra.mxu0 %v547
        %565 = vmatpush.msra.mxu0 %v546
        %566 = vmatpush.msra.mxu0 %v545
        %567 = vmatpush.msra.mxu0 %v544
        %568 = vmatpush.msra.mxu0 %v543
        %569 = vmatpush.msra.mxu0 %v542
        %570 = vmatpush.msra.mxu0 %v541
        %571 = vmatpush.msra.mxu0 %v540
        %572 = vmatmul.f32.gmra.mxu0 %v465
        %v573 = vpop.f32.mrf.mxu0
        %v574 = vadd.f32 0.0, %v573
        %575 = vdwg.mxu0
        %v576 = vadd.f32 %v537, %v574
        %v577 = vld [vmem:[%s4] sm:$0x1]
        %v579 = vperm.slane %v577, 0
        %v581 = vadd.f32 %v576, %v579
        %v582 = vxor.u32 %v581, 2147483648
        %v583 = vmul.f32 %v582, 1.442695
        %v584 = vpow.pop %v583
        %v585 = vadd.f32 %v584, 1.0
        %v586 = vrcp.pop %v585
        %v587 = vmul.f32 %v585, %v586
        %v588 = vsub.f32 1.0, %v587
        %v589 = vmul.f32 %v586, %v588
        %v590 = vadd.f32 %v586, %v589
        %vm591 = vweird.f32 %v585
        %vm592 = vweird.f32 %v586
        %vm593 = vmor %vm591, %vm592
        %v594 = vsel %vm593, %v586, %v590
        %v595 = vand.u32 2147483647, %v585
        %vm596 = vcmp.eq.f32.partialorder %v595, 8.507059e+37
        %v597 = vand.u32 %v585, 2147483648
        %v598 = vor.u32 1.1754944e-38, %v597
        %v599 = vsel %vm596, %v598, %v594
        %v600 = vmul.f32 1.0, %v599
        %v601 = vmul.f32 %v581, %v600
        %v603 = vrot.slane %v601, 7
        %v605 = vsel %vm458, %v603, %v603
        %v606 = vsel %vm453, %v605, 0.0
        %v607 = vrot.slane %v601, 1
        %v609 = vsel %vm463, %v607, %v607
        %v610 = vsel %vm454, %v609, 0.0
        %s611 = scalar_lea.vmem [#allocation8], 128
        %v612 = vld [vmem:[%s611] sm:$0xff]
        %v613 = vld [vmem:[%s611 + $0x8] sm:$0xff]
        %v614 = vld [vmem:[%s611 + $0x10] sm:$0xff]
        %v615 = vld [vmem:[%s611 + $0x18] sm:$0xff]
        %v616 = vld [vmem:[%s611 + $0x20] sm:$0xff]
        %v617 = vld [vmem:[%s611 + $0x28] sm:$0xff]
        %v618 = vld [vmem:[%s611 + $0x30] sm:$0xff]
        %v619 = vld [vmem:[%s611 + $0x38] sm:$0xff]
        %v620 = vld [vmem:[%s611 + $0x40] sm:$0xff]
        %v621 = vld [vmem:[%s611 + $0x48] sm:$0xff]
        %v622 = vld [vmem:[%s611 + $0x50] sm:$0xff]
        %v623 = vld [vmem:[%s611 + $0x58] sm:$0xff]
        %v624 = vld [vmem:[%s611 + $0x60] sm:$0xff]
        %v625 = vld [vmem:[%s611 + $0x68] sm:$0xff]
        %v626 = vld [vmem:[%s611 + $0x70] sm:$0xff]
        %v627 = vld [vmem:[%s611 + $0x78] sm:$0xff]
        %v628 = vld [vmem:[#allocation8] sm:$0xff]
        %v629 = vld [vmem:[#allocation8 + $0x8] sm:$0xff]
        %v630 = vld [vmem:[#allocation8 + $0x10] sm:$0xff]
        %v631 = vld [vmem:[#allocation8 + $0x18] sm:$0xff]
        %v632 = vld [vmem:[#allocation8 + $0x20] sm:$0xff]
        %v633 = vld [vmem:[#allocation8 + $0x28] sm:$0xff]
        %v634 = vld [vmem:[#allocation8 + $0x30] sm:$0xff]
        %v635 = vld [vmem:[#allocation8 + $0x38] sm:$0xff]
        %v636 = vld [vmem:[#allocation8 + $0x40] sm:$0xff]
        %v637 = vld [vmem:[#allocation8 + $0x48] sm:$0xff]
        %v638 = vld [vmem:[#allocation8 + $0x50] sm:$0xff]
        %v639 = vld [vmem:[#allocation8 + $0x58] sm:$0xff]
        %v640 = vld [vmem:[#allocation8 + $0x60] sm:$0xff]
        %v641 = vld [vmem:[#allocation8 + $0x68] sm:$0xff]
        %v642 = vld [vmem:[#allocation8 + $0x70] sm:$0xff]
        %v643 = vld [vmem:[#allocation8 + $0x78] sm:$0xff]
        %644 = vmatpush.msra.mxu0 %v643
        %645 = vmatpush.msra.mxu0 %v642
        %646 = vmatpush.msra.mxu0 %v641
        %647 = vmatpush.msra.mxu0 %v640
        %648 = vmatpush.msra.mxu0 %v639
        %649 = vmatpush.msra.mxu0 %v638
        %650 = vmatpush.msra.mxu0 %v637
        %651 = vmatpush.msra.mxu0 %v636
        %652 = vmatpush.msra.mxu0 %v635
        %653 = vmatpush.msra.mxu0 %v634
        %654 = vmatpush.msra.mxu0 %v633
        %655 = vmatpush.msra.mxu0 %v632
        %656 = vmatpush.msra.mxu0 %v631
        %657 = vmatpush.msra.mxu0 %v630
        %658 = vmatpush.msra.mxu0 %v629
        %659 = vmatpush.msra.mxu0 %v628
        %660 = vmatmul.f32.gmra.mxu0 %v606
        %v661 = vpop.f32.mrf.mxu0
        %v662 = vadd.f32 0.0, %v661
        %663 = vdwg.mxu0
        %664 = vmatpush.msra.mxu0 %v627
        %665 = vmatpush.msra.mxu0 %v626
        %666 = vmatpush.msra.mxu0 %v625
        %667 = vmatpush.msra.mxu0 %v624
        %668 = vmatpush.msra.mxu0 %v623
        %669 = vmatpush.msra.mxu0 %v622
        %670 = vmatpush.msra.mxu0 %v621
        %671 = vmatpush.msra.mxu0 %v620
        %672 = vmatpush.msra.mxu0 %v619
        %673 = vmatpush.msra.mxu0 %v618
        %674 = vmatpush.msra.mxu0 %v617
        %675 = vmatpush.msra.mxu0 %v616
        %676 = vmatpush.msra.mxu0 %v615
        %677 = vmatpush.msra.mxu0 %v614
        %678 = vmatpush.msra.mxu0 %v613
        %679 = vmatpush.msra.mxu0 %v612
        %680 = vmatmul.f32.gmra.mxu0 %v601
        %v681 = vpop.f32.mrf.mxu0
        %v682 = vadd.f32 %v662, %v681
        %683 = vdwg.mxu0
        %s684 = scalar_lea.vmem [#allocation8], 256
        %v685 = vld [vmem:[%s684] sm:$0xff]
        %v686 = vld [vmem:[%s684 + $0x8] sm:$0xff]
        %v687 = vld [vmem:[%s684 + $0x10] sm:$0xff]
        %v688 = vld [vmem:[%s684 + $0x18] sm:$0xff]
        %v689 = vld [vmem:[%s684 + $0x20] sm:$0xff]
        %v690 = vld [vmem:[%s684 + $0x28] sm:$0xff]
        %v691 = vld [vmem:[%s684 + $0x30] sm:$0xff]
        %v692 = vld [vmem:[%s684 + $0x38] sm:$0xff]
        %v693 = vld [vmem:[%s684 + $0x40] sm:$0xff]
        %v694 = vld [vmem:[%s684 + $0x48] sm:$0xff]
        %v695 = vld [vmem:[%s684 + $0x50] sm:$0xff]
        %v696 = vld [vmem:[%s684 + $0x58] sm:$0xff]
        %v697 = vld [vmem:[%s684 + $0x60] sm:$0xff]
        %v698 = vld [vmem:[%s684 + $0x68] sm:$0xff]
        %v699 = vld [vmem:[%s684 + $0x70] sm:$0xff]
        %v700 = vld [vmem:[%s684 + $0x78] sm:$0xff]
        %701 = vmatpush.msra.mxu0 %v700
        %702 = vmatpush.msra.mxu0 %v699
        %703 = vmatpush.msra.mxu0 %v698
        %704 = vmatpush.msra.mxu0 %v697
        %705 = vmatpush.msra.mxu0 %v696
        %706 = vmatpush.msra.mxu0 %v695
        %707 = vmatpush.msra.mxu0 %v694
        %708 = vmatpush.msra.mxu0 %v693
        %709 = vmatpush.msra.mxu0 %v692
        %710 = vmatpush.msra.mxu0 %v691
        %711 = vmatpush.msra.mxu0 %v690
        %712 = vmatpush.msra.mxu0 %v689
        %713 = vmatpush.msra.mxu0 %v688
        %714 = vmatpush.msra.mxu0 %v687
        %715 = vmatpush.msra.mxu0 %v686
        %716 = vmatpush.msra.mxu0 %v685
        %717 = vmatmul.f32.gmra.mxu0 %v610
        %v718 = vpop.f32.mrf.mxu0
        %v719 = vadd.f32 0.0, %v718
        %720 = vdwg.mxu0
        %v721 = vadd.f32 %v682, %v719
        %v722 = vld [vmem:[%s6] sm:$0x1]
        %v724 = vperm.slane %v722, 0
        %v726 = vadd.f32 %v721, %v724
        %v727 = vxor.u32 %v726, 2147483648
        %v728 = vmul.f32 %v727, 1.442695
        %v729 = vpow.pop %v728
        %v730 = vadd.f32 %v729, 1.0
        %v731 = vrcp.pop %v730
        %v732 = vmul.f32 %v730, %v731
        %v733 = vsub.f32 1.0, %v732
        %v734 = vmul.f32 %v731, %v733
        %v735 = vadd.f32 %v731, %v734
        %vm736 = vweird.f32 %v730
        %vm737 = vweird.f32 %v731
        %vm738 = vmor %vm736, %vm737
        %v739 = vsel %vm738, %v731, %v735
        %v740 = vand.u32 2147483647, %v730
        %vm741 = vcmp.eq.f32.partialorder %v740, 8.507059e+37
        %v742 = vand.u32 %v730, 2147483648
        %v743 = vor.u32 1.1754944e-38, %v742
        %v744 = vsel %vm741, %v743, %v739
        %v745 = vmul.f32 1.0, %v744
        %v746 = vmul.f32 %v726, %v745
        %v747 = vld [vmem:[#allocation10] sm:$0xff]
        %v748 = vld [vmem:[#allocation10 + $0x8] sm:$0xff]
        %v749 = vld [vmem:[#allocation10 + $0x10] sm:$0xff]
        %v750 = vld [vmem:[#allocation10 + $0x18] sm:$0xff]
        %v751 = vld [vmem:[#allocation10 + $0x20] sm:$0xff]
        %v752 = vld [vmem:[#allocation10 + $0x28] sm:$0xff]
        %v753 = vld [vmem:[#allocation10 + $0x30] sm:$0xff]
        %v754 = vld [vmem:[#allocation10 + $0x38] sm:$0xff]
        %v755 = vld [vmem:[#allocation10 + $0x40] sm:$0xff]
        %v756 = vld [vmem:[#allocation10 + $0x48] sm:$0xff]
        %v757 = vld [vmem:[#allocation10 + $0x50] sm:$0xff]
        %v758 = vld [vmem:[#allocation10 + $0x58] sm:$0xff]
        %v759 = vld [vmem:[#allocation10 + $0x60] sm:$0xff]
        %v760 = vld [vmem:[#allocation10 + $0x68] sm:$0xff]
        %v761 = vld [vmem:[#allocation10 + $0x70] sm:$0xff]
        %v762 = vld [vmem:[#allocation10 + $0x78] sm:$0xff]
        %v763 = vld [vmem:[%s8] sm:$0x1]
        %v765 = vperm.slane %v763, 0
        %767 = vmatpush.msra.mxu0 %v762
        %768 = vmatpush.msra.mxu0 %v761
        %769 = vmatpush.msra.mxu0 %v760
        %770 = vmatpush.msra.mxu0 %v759
        %771 = vmatpush.msra.mxu0 %v758
        %772 = vmatpush.msra.mxu0 %v757
        %773 = vmatpush.msra.mxu0 %v756
        %774 = vmatpush.msra.mxu0 %v755
        %775 = vmatpush.msra.mxu0 %v754
        %776 = vmatpush.msra.mxu0 %v753
        %777 = vmatpush.msra.mxu0 %v752
        %778 = vmatpush.msra.mxu0 %v751
        %779 = vmatpush.msra.mxu0 %v750
        %780 = vmatpush.msra.mxu0 %v749
        %781 = vmatpush.msra.mxu0 %v748
        %782 = vmatpush.msra.mxu0 %v747
        %783 = vmatmul.f32.gmra.mxu0 %v746
        %v784 = vpop.f32.mrf.mxu0
        %v785 = vadd.f32 %v765, %v784
        %786 = vdwg.mxu0
        %787 = vst [vmem:[%s413] sm:$0xff] %v785
        %s788 = sand.u32 %s230, 1
        %s789 = scalar_lea.sflag [#allocation4], %s788
        %s790 = sand.u32 %s230, 1
        %s791 = smul.addr %s790, 8
        %s792 = scalar_lea.vmem [#allocation11], %s791
        // Predicated region
        $region77: #{tpu_custom_call.1} parent=55 // pred_check
          %p793 = pneg %p240
        $region78: #{tpu_custom_call.1} parent=55 // pred_check_branch
          %795 = sbr.rel (%p793) target = $region80
        $region79: #{tpu_custom_call.1} parent=55 // pred_region
          %797 = vsyncadd %s789, 0
          %s798 = smul.addr %s28, 8
          %s799 = scalar_lea.hbm %s9, %s798
          %s801 = sshll.u32 %s792, 4
          %s802 = int_to_ptr.vmem [resolvable:$true] %s801
          %s803 = sshll.u32 %s799, 4
          %s804 = int_to_ptr.hbm [resolvable:$true] %s803
          %806 = dma.vmem_to_hbm [thread:$0]  %s802, 128, %s804, %s789
        $region80: #{tpu_custom_call.1} parent=55 // pred_fallthru
          _
      $region56: #{tpu_custom_call.1} parent=5 // pred_fallthru
        _
      %p807 = scmp.le.s32.totalorder 2, %s23
      // Predicated region
      $region81: #{tpu_custom_call.1} parent=5 // pred_check
        %p808 = pneg %p807
      $region82: #{tpu_custom_call.1} parent=5 // pred_check_branch
        %810 = sbr.rel (%p808) target = $region84
      $region83: #{tpu_custom_call.1} parent=5 // pred_region
        %s811 = ssub.s32 %s23, 2
        // Predicated region
        $region85: #{tpu_custom_call.1} parent=83 // pred_check
          %p812 = pneg %p246
        $region86: #{tpu_custom_call.1} parent=83 // pred_check_branch
          %814 = sbr.rel (%p812) target = $region88
        $region87: #{tpu_custom_call.1} parent=83 // pred_region
          %s815 = sand.u32 %s231, 1
          %s816 = scalar_lea.sflag [#allocation4], %s815
          %s817 = sand.u32 %s231, 1
          %s818 = smul.addr %s817, 8
          %s819 = scalar_lea.vmem [#allocation11], %s818
          %821 = dma.done %s816, 128
        $region88: #{tpu_custom_call.1} parent=83 // pred_fallthru
          _
      $region84: #{tpu_custom_call.1} parent=5 // pred_fallthru
        _
    $region6: #{tpu_custom_call.1} parent=1 // loop_footer
      %s27 = sadd.s32 1, %s23
    $region7: #{tpu_custom_call.1} parent=1 // loop_footer_branch
      %22 = sbr.rel target = $region3
    $region8: #{tpu_custom_call.1} parent=1 // loop_exit
      _
    %822 = vsyncpa [#allocation3], 1
    %s823 = scalar_lea.sflag [#allocation3], 1
    %824 = vsyncpa %s823, 1
    %825 = vsyncpa [#allocation6], 1
    %826 = vsyncpa [#allocation9], 1
    %827 = vsyncpa [#allocation4], 1
    %s828 = scalar_lea.sflag [#allocation4], 1
    %829 = vsyncpa %s828, 1

// kernel: tpu_custom_call.1
$region0: #{tpu_custom_call.1}
  #allocation0 [shape = 'u32[]', space=smem, size = 0x4, offset = 0x4, fixed_abs, tag = 'smem constant byte address 0x4 - core index']
  #allocation1 [shape = 'u32[72,128]{1,0:T(1,128)}', space=vmem, size = 0x9000, scoped, tag = 'internal scratch']
  %s0 = inlined_call_operand.hbm [shape: f32[2,8,128], index: 0, kind: input, shape index: {}]
  %s1 = inlined_call_operand.hbm [shape: f32[1,128], index: 1, kind: input, shape index: {}]
  %s2 = inlined_call_operand.vmem [shape: f32[1,128], index: 2, kind: input, shape index: {}]
  %s3 = inlined_call_operand.hbm [shape: f32[3,128,128], index: 3, kind: input, shape index: {}]
  %s4 = inlined_call_operand.vmem [shape: f32[1,128], index: 4, kind: input, shape index: {}]
  %s5 = inlined_call_operand.hbm [shape: f32[3,128,128], index: 5, kind: input, shape index: {}]
  %s6 = inlined_call_operand.vmem [shape: f32[1,128], index: 6, kind: input, shape index: {}]
  %s7 = inlined_call_operand.hbm [shape: f32[128,128], index: 7, kind: input, shape index: {}]
  %s8 = inlined_call_operand.vmem [shape: f32[1,128], index: 8, kind: input, shape index: {}]
  %s9 = inlined_call_operand.hbm [shape: f32[2,8,128], index: 9, kind: output, shape index: {}]
  %s10 = sld [smem:[#allocation0]]
  $region89: #{tpu_custom_call.1} parent=0
    _
  %s12 = ssub.s32 1, %s10
  %s13 = scalar_select 0, %s12, %s10
  $region1: #{tpu_custom_call.1} parent=0
    #allocation2 [shape = 'u8[8192]{0}', space=vmem, size = 0x2000, scoped, tag = 'input window, operand 0']
    #allocation3 [shape = 's32[2]{0}', space=sflag, size = 0x8, scoped, tag = 'scoped memory for tpu_custom_call.1']
    #allocation4 [shape = 's32[2]{0}', space=sflag, size = 0x8, scoped, tag = 'scoped memory for tpu_custom_call.1']
    #allocation5 [shape = 'u8[512]{0}', space=vmem, size = 0x400, scoped, tag = 'input window, operand 1, single buffered']
    #allocation6 [shape = 's32[1]{0}', space=sflag, size = 0x4, scoped, tag = 'scoped memory for tpu_custom_call.1']
    #allocation7 [shape = 'u8[196608]{0}', space=vmem, size = 0x30000, scoped, tag = 'input window, operand 3, single buffered']
    #allocation8 [shape = 'u8[196608]{0}', space=vmem, size = 0x30000, scoped, tag = 'input window, operand 5, single buffered']
    #allocation9 [shape = 's32[1]{0}', space=sflag, size = 0x4, scoped, tag = 'scoped memory for tpu_custom_call.1']
    #allocation10 [shape = 'u8[65536]{0}', space=vmem, size = 0x10000, scoped, tag = 'input window, operand 7, single buffered']
    #allocation11 [shape = 'u8[8192]{0}', space=vmem, size = 0x2000, scoped, tag = 'output window, operand 0']
    %14 = vsyncpa [#allocation3], 0
    %s15 = scalar_lea.sflag [#allocation3], 1
    %16 = vsyncpa %s15, 0
    %17 = vsyncpa [#allocation6], 0
    %18 = vsyncpa [#allocation9], 0
    %19 = vsyncpa [#allocation4], 0
    %s20 = scalar_lea.sflag [#allocation4], 1
    %21 = vsyncpa %s20, 0
    loop: start=0, step=1, limit=4
    $region2: #{tpu_custom_call.1} parent=1 // loop_pre_header
      _
    $region3: #{tpu_custom_call.1} parent=1 // loop_header
      %s23 = sphi 0, %s27
      %p24 = scmp.ge.s32.totalorder %s23, 4
      %s33 = sphi 0, %s35
      %s36 = sphi 0, %s33
      %s37 = sphi 0, %s36
      %s53 = sphi 0, %s37
      %s57 = sphi 0, %s57
      %s59 = sphi 0, %s57
      %s60 = sphi 0, %s59
      %s74 = sphi 0, %s60
      %s78 = sphi 0, %s78
      %s80 = sphi 0, %s78
      %s81 = sphi 0, %s80
      %s95 = sphi 0, %s81
      %s99 = sphi 0, %s99
      %s101 = sphi 0, %s99
      %s102 = sphi 0, %s101
      %s116 = sphi 0, %s102
      %s120 = sphi 0, %s120
      %s122 = sphi 0, %s120
      %s123 = sphi 0, %s122
      %s137 = sphi 0, %s123
      %s141 = sphi 0, %s141
      %s143 = sphi 0, %s141
      %s144 = sphi 0, %s143
      %s158 = sphi 0, %s144
      %s162 = sphi 0, %s162
      %s164 = sphi 0, %s162
      %s165 = sphi 0, %s164
      %s179 = sphi 0, %s165
      %s183 = sphi 0, %s183
      %s185 = sphi 0, %s183
      %s186 = sphi 0, %s185
      %s200 = sphi 0, %s186
      %s204 = sphi 0, %s204
      %s206 = sphi 0, %s204
      %s207 = sphi 0, %s206
      %s221 = sphi 0, %s207
      %s227 = sphi 0, %s229
      %s230 = sphi 0, %s227
      %s231 = sphi 0, %s230
      %s247 = sphi 0, %s231
    $region4: #{tpu_custom_call.1} parent=1 // loop_header_branch
      %26 = sbr.rel (%p24) target = $region8
    $region5: #{tpu_custom_call.1} parent=1 // loop_body
      %s28 = ssub.s32 %s23, 1
      %s29 = ssub.s32 %s23, 2
      %s30 = sadd.s32 %s23, 1
      %s31 = ssub.s32 %s23, %s30
      %p32 = scmp.eq.s32.totalorder %s31, 0
      %s34 = sadd.s32 %s33, 1
      %s35 = scalar_select %p32, %s33, %s34
      %p38 = pneg %p32
      %p39 = scmp.eq.s32.totalorder %s23, 1
      %p40 = por %p38, %p39
      %p41 = scmp.ne.s32.totalorder %s33, %s36
      %p42 = scmp.eq.s32.totalorder %s23, 0
      %p43 = por %p41, %p42
      %p44 = scmp.ne.s32.totalorder %s33, %s36
      %p45 = scmp.eq.s32.totalorder %s28, 1
      %p46 = por %p44, %p45
      %p47 = scmp.ne.s32.totalorder %s36, %s37
      %p48 = scmp.eq.s32.totalorder %s28, 0
      %p49 = por %p47, %p48
      %p50 = scmp.ne.s32.totalorder %s36, %s37
      %p51 = scmp.eq.s32.totalorder %s29, 1
      %p52 = por %p50, %p51
      %p54 = scmp.ne.s32.totalorder %s37, %s53
      %p55 = scmp.eq.s32.totalorder %s29, 0
      %p56 = por %p54, %p55
      %s58 = sadd.s32 %s57, 1
      %p61 = scmp.eq.s32.totalorder %s23, 1
      %p62 = scmp.ne.s32.totalorder %s57, %s59
      %p63 = scmp.eq.s32.totalorder %s23, 0
      %p64 = por %p62, %p63
      %p65 = scmp.ne.s32.totalorder %s57, %s59
      %p66 = scmp.eq.s32.totalorder %s28, 1
      %p67 = por %p65, %p66
      %p68 = scmp.ne.s32.totalorder %s59, %s60
      %p69 = scmp.eq.s32.totalorder %s28, 0
      %p70 = por %p68, %p69
      %p71 = scmp.ne.s32.totalorder %s59, %s60
      %p72 = scmp.eq.s32.totalorder %s29, 1
      %p73 = por %p71, %p72
      %p75 = scmp.ne.s32.totalorder %s60, %s74
      %p76 = scmp.eq.s32.totalorder %s29, 0
      %p77 = por %p75, %p76
      %s79 = sadd.s32 %s78, 1
      %p82 = scmp.eq.s32.totalorder %s23, 1
      %p83 = scmp.ne.s32.totalorder %s78, %s80
      %p84 = scmp.eq.s32.totalorder %s23, 0
      %p85 = por %p83, %p84
      %p86 = scmp.ne.s32.totalorder %s78, %s80
      %p87 = scmp.eq.s32.totalorder %s28, 1
      %p88 = por %p86, %p87
      %p89 = scmp.ne.s32.totalorder %s80, %s81
      %p90 = scmp.eq.s32.totalorder %s28, 0
      %p91 = por %p89, %p90
      %p92 = scmp.ne.s32.totalorder %s80, %s81
      %p93 = scmp.eq.s32.totalorder %s29, 1
      %p94 = por %p92, %p93
      %p96 = scmp.ne.s32.totalorder %s81, %s95
      %p97 = scmp.eq.s32.totalorder %s29, 0
      %p98 = por %p96, %p97
      %s100 = sadd.s32 %s99, 1
      %p103 = scmp.eq.s32.totalorder %s23, 1
      %p104 = scmp.ne.s32.totalorder %s99, %s101
      %p105 = scmp.eq.s32.totalorder %s23, 0
      %p106 = por %p104, %p105
      %p107 = scmp.ne.s32.totalorder %s99, %s101
      %p108 = scmp.eq.s32.totalorder %s28, 1
      %p109 = por %p107, %p108
      %p110 = scmp.ne.s32.totalorder %s101, %s102
      %p111 = scmp.eq.s32.totalorder %s28, 0
      %p112 = por %p110, %p111
      %p113 = scmp.ne.s32.totalorder %s101, %s102
      %p114 = scmp.eq.s32.totalorder %s29, 1
      %p115 = por %p113, %p114
      %p117 = scmp.ne.s32.totalorder %s102, %s116
      %p118 = scmp.eq.s32.totalorder %s29, 0
      %p119 = por %p117, %p118
      %s121 = sadd.s32 %s120, 1
      %p124 = scmp.eq.s32.totalorder %s23, 1
      %p125 = scmp.ne.s32.totalorder %s120, %s122
      %p126 = scmp.eq.s32.totalorder %s23, 0
      %p127 = por %p125, %p126
      %p128 = scmp.ne.s32.totalorder %s120, %s122
      %p129 = scmp.eq.s32.totalorder %s28, 1
      %p130 = por %p128, %p129
      %p131 = scmp.ne.s32.totalorder %s122, %s123
      %p132 = scmp.eq.s32.totalorder %s28, 0
      %p133 = por %p131, %p132
      %p134 = scmp.ne.s32.totalorder %s122, %s123
      %p135 = scmp.eq.s32.totalorder %s29, 1
      %p136 = por %p134, %p135
      %p138 = scmp.ne.s32.totalorder %s123, %s137
      %p139 = scmp.eq.s32.totalorder %s29, 0
      %p140 = por %p138, %p139
      %s142 = sadd.s32 %s141, 1
      %p145 = scmp.eq.s32.totalorder %s23, 1
      %p146 = scmp.ne.s32.totalorder %s141, %s143
      %p147 = scmp.eq.s32.totalorder %s23, 0
      %p148 = por %p146, %p147
      %p149 = scmp.ne.s32.totalorder %s141, %s143
      %p150 = scmp.eq.s32.totalorder %s28, 1
      %p151 = por %p149, %p150
      %p152 = scmp.ne.s32.totalorder %s143, %s144
      %p153 = scmp.eq.s32.totalorder %s28, 0
      %p154 = por %p152, %p153
      %p155 = scmp.ne.s32.totalorder %s143, %s144
      %p156 = scmp.eq.s32.totalorder %s29, 1
      %p157 = por %p155, %p156
      %p159 = scmp.ne.s32.totalorder %s144, %s158
      %p160 = scmp.eq.s32.totalorder %s29, 0
      %p161 = por %p159, %p160
      %s163 = sadd.s32 %s162, 1
      %p166 = scmp.eq.s32.totalorder %s23, 1
      %p167 = scmp.ne.s32.totalorder %s162, %s164
      %p168 = scmp.eq.s32.totalorder %s23, 0
      %p169 = por %p167, %p168
      %p170 = scmp.ne.s32.totalorder %s162, %s164
      %p171 = scmp.eq.s32.totalorder %s28, 1
      %p172 = por %p170, %p171
      %p173 = scmp.ne.s32.totalorder %s164, %s165
      %p174 = scmp.eq.s32.totalorder %s28, 0
      %p175 = por %p173, %p174
      %p176 = scmp.ne.s32.totalorder %s164, %s165
      %p177 = scmp.eq.s32.totalorder %s29, 1
      %p178 = por %p176, %p177
      %p180 = scmp.ne.s32.totalorder %s165, %s179
      %p181 = scmp.eq.s32.totalorder %s29, 0
      %p182 = por %p180, %p181
      %s184 = sadd.s32 %s183, 1
      %p187 = scmp.eq.s32.totalorder %s23, 1
      %p188 = scmp.ne.s32.totalorder %s183, %s185
      %p189 = scmp.eq.s32.totalorder %s23, 0
      %p190 = por %p188, %p189
      %p191 = scmp.ne.s32.totalorder %s183, %s185
      %p192 = scmp.eq.s32.totalorder %s28, 1
      %p193 = por %p191, %p192
      %p194 = scmp.ne.s32.totalorder %s185, %s186
      %p195 = scmp.eq.s32.totalorder %s28, 0
      %p196 = por %p194, %p195
      %p197 = scmp.ne.s32.totalorder %s185, %s186
      %p198 = scmp.eq.s32.totalorder %s29, 1
      %p199 = por %p197, %p198
      %p201 = scmp.ne.s32.totalorder %s186, %s200
      %p202 = scmp.eq.s32.totalorder %s29, 0
      %p203 = por %p201, %p202
      %s205 = sadd.s32 %s204, 1
      %p208 = scmp.eq.s32.totalorder %s23, 1
      %p209 = scmp.ne.s32.totalorder %s204, %s206
      %p210 = scmp.eq.s32.totalorder %s23, 0
      %p211 = por %p209, %p210
      %p212 = scmp.ne.s32.totalorder %s204, %s206
      %p213 = scmp.eq.s32.totalorder %s28, 1
      %p214 = por %p212, %p213
      %p215 = scmp.ne.s32.totalorder %s206, %s207
      %p216 = scmp.eq.s32.totalorder %s28, 0
      %p217 = por %p215, %p216
      %p218 = scmp.ne.s32.totalorder %s206, %s207
      %p219 = scmp.eq.s32.totalorder %s29, 1
      %p220 = por %p218, %p219
      %p222 = scmp.ne.s32.totalorder %s207, %s221
      %p223 = scmp.eq.s32.totalorder %s29, 0
      %p224 = por %p222, %p223
      %s225 = ssub.s32 %s23, %s30
      %p226 = scmp.eq.s32.totalorder %s225, 0
      %s228 = sadd.s32 %s227, 1
      %s229 = scalar_select %p226, %s227, %s228
      %p232 = pneg %p226
      %p233 = scmp.eq.s32.totalorder %s23, 1
      %p234 = por %p232, %p233
      %p235 = scmp.ne.s32.totalorder %s227, %s230
      %p236 = scmp.eq.s32.totalorder %s23, 0
      %p237 = por %p235, %p236
      %p238 = scmp.ne.s32.totalorder %s227, %s230
      %p239 = scmp.eq.s32.totalorder %s28, 1
      %p240 = por %p238, %p239
      %p241 = scmp.ne.s32.totalorder %s230, %s231
      %p242 = scmp.eq.s32.totalorder %s28, 0
      %p243 = por %p241, %p242
      %p244 = scmp.ne.s32.totalorder %s230, %s231
      %p245 = scmp.eq.s32.totalorder %s29, 1
      %p246 = por %p244, %p245
      %p248 = scmp.ne.s32.totalorder %s231, %s247
      %p249 = scmp.eq.s32.totalorder %s29, 0
      %p250 = por %p248, %p249
      %p251 = scmp.le.s32.totalorder 1, %s23
      %p252 = scmp.lt.s32.totalorder %s23, 3
      %p253 = pnand %p251, %p252
      %p254 = pneg %p253
      // Predicated region
      $region9: #{tpu_custom_call.1} parent=5 // pred_check
        _
      $region10: #{tpu_custom_call.1} parent=5 // pred_check_branch
        %256 = sbr.rel (%p253) target = $region12
      $region11: #{tpu_custom_call.1} parent=5 // pred_region
        %s257 = ssub.s32 %s23, 1
        // Predicated region
        $region13: #{tpu_custom_call.1} parent=11 // pred_check
          %p258 = pneg %p70
        $region14: #{tpu_custom_call.1} parent=11 // pred_check_branch
          %260 = sbr.rel (%p258) target = $region16
        $region15: #{tpu_custom_call.1} parent=11 // pred_region
          %262 = vsyncadd [#allocation6], 0
          %s264 = sshll.u32 %s1, 4
          %s265 = int_to_ptr.hbm [resolvable:$true] %s264
          %s266 = sshll.u32 [#allocation5], 4
          %s267 = int_to_ptr.vmem [resolvable:$true] %s266
          %269 = dma.hbm_to_vmem [thread:$0]  %s265, 16, %s267, [#allocation6]
        $region16: #{tpu_custom_call.1} parent=11 // pred_fallthru
          _
        // Predicated region
        $region17: #{tpu_custom_call.1} parent=11 // pred_check
          %p270 = pneg %p91
        $region18: #{tpu_custom_call.1} parent=11 // pred_check_branch
          %272 = sbr.rel (%p270) target = $region20
        $region19: #{tpu_custom_call.1} parent=11 // pred_region
          _
        $region20: #{tpu_custom_call.1} parent=11 // pred_fallthru
          _
        // Predicated region
        $region21: #{tpu_custom_call.1} parent=11 // pred_check
          %p273 = pneg %p112
        $region22: #{tpu_custom_call.1} parent=11 // pred_check_branch
          %275 = sbr.rel (%p273) target = $region24
        $region23: #{tpu_custom_call.1} parent=11 // pred_region
          %277 = vsyncadd [#allocation6], 0
          %s278 = sshll.u32 %s3, 4
          %s279 = int_to_ptr.hbm [resolvable:$true] %s278
          %s280 = sshll.u32 [#allocation7], 4
          %s281 = int_to_ptr.vmem [resolvable:$true] %s280
          %286 = dma.hbm_to_vmem [thread:$0]  %s279, 6144, %s281, [#allocation6], 128, 128, 8
        $region24: #{tpu_custom_call.1} parent=11 // pred_fallthru
          _
        // Predicated region
        $region25: #{tpu_custom_call.1} parent=11 // pred_check
          %p287 = pneg %p133
        $region26: #{tpu_custom_call.1} parent=11 // pred_check_branch
          %289 = sbr.rel (%p287) target = $region28
        $region27: #{tpu_custom_call.1} parent=11 // pred_region
          _
        $region28: #{tpu_custom_call.1} parent=11 // pred_fallthru
          _
        // Predicated region
        $region29: #{tpu_custom_call.1} parent=11 // pred_check
          %p290 = pneg %p154
        $region30: #{tpu_custom_call.1} parent=11 // pred_check_branch
          %292 = sbr.rel (%p290) target = $region32
        $region31: #{tpu_custom_call.1} parent=11 // pred_region
          %294 = vsyncadd [#allocation9], 0
          %s295 = sshll.u32 %s5, 4
          %s296 = int_to_ptr.hbm [resolvable:$true] %s295
          %s297 = sshll.u32 [#allocation8], 4
          %s298 = int_to_ptr.vmem [resolvable:$true] %s297
          %303 = dma.hbm_to_vmem [thread:$0]  %s296, 6144, %s298, [#allocation9], 128, 128, 8
        $region32: #{tpu_custom_call.1} parent=11 // pred_fallthru
          _
        // Predicated region
        $region33: #{tpu_custom_call.1} parent=11 // pred_check
          %p304 = pneg %p175
        $region34: #{tpu_custom_call.1} parent=11 // pred_check_branch
          %306 = sbr.rel (%p304) target = $region36
        $region35: #{tpu_custom_call.1} parent=11 // pred_region
          _
        $region36: #{tpu_custom_call.1} parent=11 // pred_fallthru
          _
        // Predicated region
        $region37: #{tpu_custom_call.1} parent=11 // pred_check
          %p307 = pneg %p196
        $region38: #{tpu_custom_call.1} parent=11 // pred_check_branch
          %309 = sbr.rel (%p307) target = $region40
        $region39: #{tpu_custom_call.1} parent=11 // pred_region
          %311 = vsyncadd [#allocation9], 0
          %s312 = sshll.u32 %s7, 4
          %s313 = int_to_ptr.hbm [resolvable:$true] %s312
          %s314 = sshll.u32 [#allocation10], 4
          %s315 = int_to_ptr.vmem [resolvable:$true] %s314
          %320 = dma.hbm_to_vmem [thread:$0]  %s313, 2048, %s315, [#allocation9], 128, 128, 8
        $region40: #{tpu_custom_call.1} parent=11 // pred_fallthru
          _
        // Predicated region
        $region41: #{tpu_custom_call.1} parent=11 // pred_check
          %p321 = pneg %p217
        $region42: #{tpu_custom_call.1} parent=11 // pred_check_branch
          %323 = sbr.rel (%p321) target = $region44
        $region43: #{tpu_custom_call.1} parent=11 // pred_region
          _
        $region44: #{tpu_custom_call.1} parent=11 // pred_fallthru
          _
      $region12: #{tpu_custom_call.1} parent=5 // pred_fallthru
        _
      %p324 = scmp.lt.s32.totalorder %s23, 2
      // Predicated region
      $region45: #{tpu_custom_call.1} parent=5 // pred_check
        %p325 = pneg %p324
      $region46: #{tpu_custom_call.1} parent=5 // pred_check_branch
        %327 = sbr.rel (%p325) target = $region48
      $region47: #{tpu_custom_call.1} parent=5 // pred_region
        // Predicated region
        $region49: #{tpu_custom_call.1} parent=47 // pred_check
          %p328 = pneg %p43
        $region50: #{tpu_custom_call.1} parent=47 // pred_check_branch
          %330 = sbr.rel (%p328) target = $region52
        $region51: #{tpu_custom_call.1} parent=47 // pred_region
          %s331 = sand.u32 %s33, 1
          %s332 = scalar_lea.sflag [#allocation3], %s331
          %s333 = sand.u32 %s33, 1
          %s334 = smul.addr %s333, 8
          %s335 = scalar_lea.vmem [#allocation2], %s334
          %337 = vsyncadd %s332, 0
          %s338 = smul.addr %s23, 8
          %s339 = scalar_lea.hbm %s0, %s338
          %s341 = sshll.u32 %s339, 4
          %s342 = int_to_ptr.hbm [resolvable:$true] %s341
          %s343 = sshll.u32 %s335, 4
          %s344 = int_to_ptr.vmem [resolvable:$true] %s343
          %346 = dma.hbm_to_vmem [thread:$0]  %s342, 128, %s344, %s332
        $region52: #{tpu_custom_call.1} parent=47 // pred_fallthru
          _
      $region48: #{tpu_custom_call.1} parent=5 // pred_fallthru
        _
      %p347 = scmp.le.s32.totalorder 1, %s23
      %p348 = scmp.lt.s32.totalorder %s23, 3
      %p349 = pnand %p347, %p348
      %p350 = pneg %p349
      // Predicated region
      $region53: #{tpu_custom_call.1} parent=5 // pred_check
        _
      $region54: #{tpu_custom_call.1} parent=5 // pred_check_branch
        %352 = sbr.rel (%p349) target = $region56
      $region55: #{tpu_custom_call.1} parent=5 // pred_region
        %s353 = ssub.s32 %s23, 1
        %s354 = sand.u32 %s36, 1
        %s355 = scalar_lea.sflag [#allocation3], %s354
        %s356 = sand.u32 %s36, 1
        %s357 = smul.addr %s356, 8
        %s358 = scalar_lea.vmem [#allocation2], %s357
        // Predicated region
        $region57: #{tpu_custom_call.1} parent=55 // pred_check
          %p359 = pneg %p49
        $region58: #{tpu_custom_call.1} parent=55 // pred_check_branch
          %361 = sbr.rel (%p359) target = $region60
        $region59: #{tpu_custom_call.1} parent=55 // pred_region
          %363 = dma.done %s355, 128
        $region60: #{tpu_custom_call.1} parent=55 // pred_fallthru
          _
        // Predicated region
        $region61: #{tpu_custom_call.1} parent=55 // pred_check
          %p364 = pneg %p70
        $region62: #{tpu_custom_call.1} parent=55 // pred_check_branch
          %366 = sbr.rel (%p364) target = $region64
        $region63: #{tpu_custom_call.1} parent=55 // pred_region
          %368 = dma.done [#allocation6], 16
        $region64: #{tpu_custom_call.1} parent=55 // pred_fallthru
          _
        // Predicated region
        $region65: #{tpu_custom_call.1} parent=55 // pred_check
          %p369 = pneg %p112
        $region66: #{tpu_custom_call.1} parent=55 // pred_check_branch
          %371 = sbr.rel (%p369) target = $region68
        $region67: #{tpu_custom_call.1} parent=55 // pred_region
          %373 = dma.done [#allocation6], 6144
        $region68: #{tpu_custom_call.1} parent=55 // pred_fallthru
          _
        // Predicated region
        $region69: #{tpu_custom_call.1} parent=55 // pred_check
          %p374 = pneg %p154
        $region70: #{tpu_custom_call.1} parent=55 // pred_check_branch
          %376 = sbr.rel (%p374) target = $region72
        $region71: #{tpu_custom_call.1} parent=55 // pred_region
          %378 = dma.done [#allocation9], 6144
        $region72: #{tpu_custom_call.1} parent=55 // pred_fallthru
          _
        // Predicated region
        $region73: #{tpu_custom_call.1} parent=55 // pred_check
          %p379 = pneg %p196
        $region74: #{tpu_custom_call.1} parent=55 // pred_check_branch
          %381 = sbr.rel (%p379) target = $region76
        $region75: #{tpu_custom_call.1} parent=55 // pred_region
          %383 = dma.done [#allocation9], 2048
        $region76: #{tpu_custom_call.1} parent=55 // pred_fallthru
          _
        %s384 = sand.u32 %s36, 1
        %s385 = scalar_lea.sflag [#allocation3], %s384
        %s386 = sand.u32 %s36, 1
        %s387 = smul.addr %s386, 8
        %s388 = scalar_lea.vmem [#allocation2], %s387
        %p389 = pneg %p49
        %p390 = pneg %p46
        %p391 = pneg %p70
        %p392 = pneg %p67
        %p393 = pneg %p91
        %p394 = pneg %p88
        %p395 = pneg %p112
        %p396 = pneg %p109
        %p397 = pneg %p133
        %p398 = pneg %p130
        %p399 = pneg %p154
        %p400 = pneg %p151
        %p401 = pneg %p175
        %p402 = pneg %p172
        %p403 = pneg %p196
        %p404 = pneg %p193
        %p405 = pneg %p217
        %p406 = pneg %p214
        %p407 = pneg %p243
        %p408 = pneg %p240
        %s409 = sand.u32 %s230, 1
        %s410 = scalar_lea.sflag [#allocation4], %s409
        %s411 = sand.u32 %s230, 1
        %s412 = smul.addr %s411, 8
        %s413 = scalar_lea.vmem [#allocation11], %s412
        %v414 = vld [vmem:[%s358] sm:$0xff]
        %415 = vadd.xlane.f32.xlu0 %v414
        %v416 = vpop.xlane.xlu0 %415
        %v417 = vmul.f32 %v416, 0.03125
        %v418 = vsub.f32 %v414, %v417
        %v419 = vlaneseq
        %v420 = vand.u32 %v419, 127
        %vm421 = vcmp.lt.s32.totalorder %v420, 32
        %v422 = vsel %vm421, 1, 0
        %vm423 = vcmp.eq.s32.totalorder %v422, 1
        %v424 = vsel %vm423, %v418, 0.0
        %v425 = vmul.f32 %v424, %v424
        %426 = vadd.xlane.f32.xlu0 %v425
        %v427 = vpop.xlane.xlu0 %426
        %v428 = vmul.f32 %v427, 0.03125
        %v429 = vadd.f32 %v428, 1e-05
        %v430 = vrsqrt.pop %v429
        %v431 = vmul.f32 %v430, %v429
        %v432 = vmul.f32 %v431, %v430
        %v433 = vmul.f32 0.5, %v432
        %v434 = vsub.f32 1.5, %v433
        %v435 = vmul.f32 %v430, %v434
        %vm436 = vweird.f32 %v429
        %vm437 = vweird.f32 %v430
        %vm438 = vmor %vm436, %vm437
        %v439 = vsel %vm438, %v430, %v435
        %v440 = vmul.f32 %v424, %v439
        %v441 = vld [vmem:[#allocation5] sm:$0x1]
        %v443 = vperm.slane %v441, 0
        %v445 = vmul.f32 %v440, %v443
        %v446 = vld [vmem:[%s2] sm:$0x1]
        %v448 = vperm.slane %v446, 0
        %v450 = vadd.f32 %v445, %v448
        %v451 = vlaneseq
        %v452 = vshrl.u32 %v451, 7
        %vm453 = vcmp.ge.s32.totalorder %v452, 1
        %vm454 = vcmp.le.s32.totalorder %v452, 6
        %v456 = vrot.slane %v450, 7
        %vm458 = vcmask 1040384
        %v459 = vsel %vm458, %v456, %v456
        %v460 = vsel %vm453, %v459, 0.0
        %v461 = vrot.slane %v450, 1
        %vm463 = vcmask 1046528
        %v464 = vsel %vm463, %v461, %v461
        %v465 = vsel %vm454, %v464, 0.0
        %s466 = scalar_lea.vmem [#allocation7], 128
        %v467 = vld [vmem:[%s466] sm:$0xff]
        %v468 = vld [vmem:[%s466 + $0x8] sm:$0xff]
        %v469 = vld [vmem:[%s466 + $0x10] sm:$0xff]
        %v470 = vld [vmem:[%s466 + $0x18] sm:$0xff]
        %v471 = vld [vmem:[%s466 + $0x20] sm:$0xff]
        %v472 = vld [vmem:[%s466 + $0x28] sm:$0xff]
        %v473 = vld [vmem:[%s466 + $0x30] sm:$0xff]
        %v474 = vld [vmem:[%s466 + $0x38] sm:$0xff]
        %v475 = vld [vmem:[%s466 + $0x40] sm:$0xff]
        %v476 = vld [vmem:[%s466 + $0x48] sm:$0xff]
        %v477 = vld [vmem:[%s466 + $0x50] sm:$0xff]
        %v478 = vld [vmem:[%s466 + $0x58] sm:$0xff]
        %v479 = vld [vmem:[%s466 + $0x60] sm:$0xff]
        %v480 = vld [vmem:[%s466 + $0x68] sm:$0xff]
        %v481 = vld [vmem:[%s466 + $0x70] sm:$0xff]
        %v482 = vld [vmem:[%s466 + $0x78] sm:$0xff]
        %v483 = vld [vmem:[#allocation7] sm:$0xff]
        %v484 = vld [vmem:[#allocation7 + $0x8] sm:$0xff]
        %v485 = vld [vmem:[#allocation7 + $0x10] sm:$0xff]
        %v486 = vld [vmem:[#allocation7 + $0x18] sm:$0xff]
        %v487 = vld [vmem:[#allocation7 + $0x20] sm:$0xff]
        %v488 = vld [vmem:[#allocation7 + $0x28] sm:$0xff]
        %v489 = vld [vmem:[#allocation7 + $0x30] sm:$0xff]
        %v490 = vld [vmem:[#allocation7 + $0x38] sm:$0xff]
        %v491 = vld [vmem:[#allocation7 + $0x40] sm:$0xff]
        %v492 = vld [vmem:[#allocation7 + $0x48] sm:$0xff]
        %v493 = vld [vmem:[#allocation7 + $0x50] sm:$0xff]
        %v494 = vld [vmem:[#allocation7 + $0x58] sm:$0xff]
        %v495 = vld [vmem:[#allocation7 + $0x60] sm:$0xff]
        %v496 = vld [vmem:[#allocation7 + $0x68] sm:$0xff]
        %v497 = vld [vmem:[#allocation7 + $0x70] sm:$0xff]
        %v498 = vld [vmem:[#allocation7 + $0x78] sm:$0xff]
        %499 = vmatpush.msra.mxu0 %v498
        %500 = vmatpush.msra.mxu0 %v497
        %501 = vmatpush.msra.mxu0 %v496
        %502 = vmatpush.msra.mxu0 %v495
        %503 = vmatpush.msra.mxu0 %v494
        %504 = vmatpush.msra.mxu0 %v493
        %505 = vmatpush.msra.mxu0 %v492
        %506 = vmatpush.msra.mxu0 %v491
        %507 = vmatpush.msra.mxu0 %v490
        %508 = vmatpush.msra.mxu0 %v489
        %509 = vmatpush.msra.mxu0 %v488
        %510 = vmatpush.msra.mxu0 %v487
        %511 = vmatpush.msra.mxu0 %v486
        %512 = vmatpush.msra.mxu0 %v485
        %513 = vmatpush.msra.mxu0 %v484
        %514 = vmatpush.msra.mxu0 %v483
        %515 = vmatmul.f32.gmra.mxu0 %v460
        %v516 = vpop.f32.mrf.mxu0
        %v517 = vadd.f32 0.0, %v516
        %518 = vdwg.mxu0
        %519 = vmatpush.msra.mxu0 %v482
        %520 = vmatpush.msra.mxu0 %v481
        %521 = vmatpush.msra.mxu0 %v480
        %522 = vmatpush.msra.mxu0 %v479
        %523 = vmatpush.msra.mxu0 %v478
        %524 = vmatpush.msra.mxu0 %v477
        %525 = vmatpush.msra.mxu0 %v476
        %526 = vmatpush.msra.mxu0 %v475
        %527 = vmatpush.msra.mxu0 %v474
        %528 = vmatpush.msra.mxu0 %v473
        %529 = vmatpush.msra.mxu0 %v472
        %530 = vmatpush.msra.mxu0 %v471
        %531 = vmatpush.msra.mxu0 %v470
        %532 = vmatpush.msra.mxu0 %v469
        %533 = vmatpush.msra.mxu0 %v468
        %534 = vmatpush.msra.mxu0 %v467
        %535 = vmatmul.f32.gmra.mxu0 %v450
        %v536 = vpop.f32.mrf.mxu0
        %v537 = vadd.f32 %v517, %v536
        %538 = vdwg.mxu0
        %s539 = scalar_lea.vmem [#allocation7], 256
        %v540 = vld [vmem:[%s539] sm:$0xff]
        %v541 = vld [vmem:[%s539 + $0x8] sm:$0xff]
        %v542 = vld [vmem:[%s539 + $0x10] sm:$0xff]
        %v543 = vld [vmem:[%s539 + $0x18] sm:$0xff]
        %v544 = vld [vmem:[%s539 + $0x20] sm:$0xff]
        %v545 = vld [vmem:[%s539 + $0x28] sm:$0xff]
        %v546 = vld [vmem:[%s539 + $0x30] sm:$0xff]
        %v547 = vld [vmem:[%s539 + $0x38] sm:$0xff]
        %v548 = vld [vmem:[%s539 + $0x40] sm:$0xff]
        %v549 = vld [vmem:[%s539 + $0x48] sm:$0xff]
        %v550 = vld [vmem:[%s539 + $0x50] sm:$0xff]
        %v551 = vld [vmem:[%s539 + $0x58] sm:$0xff]
        %v552 = vld [vmem:[%s539 + $0x60] sm:$0xff]
        %v553 = vld [vmem:[%s539 + $0x68] sm:$0xff]
        %v554 = vld [vmem:[%s539 + $0x70] sm:$0xff]
        %v555 = vld [vmem:[%s539 + $0x78] sm:$0xff]
        %556 = vmatpush.msra.mxu0 %v555
        %557 = vmatpush.msra.mxu0 %v554
        %558 = vmatpush.msra.mxu0 %v553
        %559 = vmatpush.msra.mxu0 %v552
        %560 = vmatpush.msra.mxu0 %v551
        %561 = vmatpush.msra.mxu0 %v550
        %562 = vmatpush.msra.mxu0 %v549
        %563 = vmatpush.msra.mxu0 %v548
        %564 = vmatpush.msra.mxu0 %v547
        %565 = vmatpush.msra.mxu0 %v546
        %566 = vmatpush.msra.mxu0 %v545
        %567 = vmatpush.msra.mxu0 %v544
        %568 = vmatpush.msra.mxu0 %v543
        %569 = vmatpush.msra.mxu0 %v542
        %570 = vmatpush.msra.mxu0 %v541
        %571 = vmatpush.msra.mxu0 %v540
        %572 = vmatmul.f32.gmra.mxu0 %v465
        %v573 = vpop.f32.mrf.mxu0
        %v574 = vadd.f32 0.0, %v573
        %575 = vdwg.mxu0
        %v576 = vadd.f32 %v537, %v574
        %v577 = vld [vmem:[%s4] sm:$0x1]
        %v579 = vperm.slane %v577, 0
        %v581 = vadd.f32 %v576, %v579
        %v582 = vxor.u32 %v581, 2147483648
        %v583 = vmul.f32 %v582, 1.442695
        %v584 = vpow.pop %v583
        %v585 = vadd.f32 %v584, 1.0
        %v586 = vrcp.pop %v585
        %v587 = vmul.f32 %v585, %v586
        %v588 = vsub.f32 1.0, %v587
        %v589 = vmul.f32 %v586, %v588
        %v590 = vadd.f32 %v586, %v589
        %vm591 = vweird.f32 %v585
        %vm592 = vweird.f32 %v586
        %vm593 = vmor %vm591, %vm592
        %v594 = vsel %vm593, %v586, %v590
        %v595 = vand.u32 2147483647, %v585
        %vm596 = vcmp.eq.f32.partialorder %v595, 8.507059e+37
        %v597 = vand.u32 %v585, 2147483648
        %v598 = vor.u32 1.1754944e-38, %v597
        %v599 = vsel %vm596, %v598, %v594
        %v600 = vmul.f32 1.0, %v599
        %v601 = vmul.f32 %v581, %v600
        %v603 = vrot.slane %v601, 7
        %v605 = vsel %vm458, %v603, %v603
        %v606 = vsel %vm453, %v605, 0.0
        %v607 = vrot.slane %v601, 1
        %v609 = vsel %vm463, %v607, %v607
        %v610 = vsel %vm454, %v609, 0.0
        %s611 = scalar_lea.vmem [#allocation8], 128
        %v612 = vld [vmem:[%s611] sm:$0xff]
        %v613 = vld [vmem:[%s611 + $0x8] sm:$0xff]
        %v614 = vld [vmem:[%s611 + $0x10] sm:$0xff]
        %v615 = vld [vmem:[%s611 + $0x18] sm:$0xff]
        %v616 = vld [vmem:[%s611 + $0x20] sm:$0xff]
        %v617 = vld [vmem:[%s611 + $0x28] sm:$0xff]
        %v618 = vld [vmem:[%s611 + $0x30] sm:$0xff]
        %v619 = vld [vmem:[%s611 + $0x38] sm:$0xff]
        %v620 = vld [vmem:[%s611 + $0x40] sm:$0xff]
        %v621 = vld [vmem:[%s611 + $0x48] sm:$0xff]
        %v622 = vld [vmem:[%s611 + $0x50] sm:$0xff]
        %v623 = vld [vmem:[%s611 + $0x58] sm:$0xff]
        %v624 = vld [vmem:[%s611 + $0x60] sm:$0xff]
        %v625 = vld [vmem:[%s611 + $0x68] sm:$0xff]
        %v626 = vld [vmem:[%s611 + $0x70] sm:$0xff]
        %v627 = vld [vmem:[%s611 + $0x78] sm:$0xff]
        %v628 = vld [vmem:[#allocation8] sm:$0xff]
        %v629 = vld [vmem:[#allocation8 + $0x8] sm:$0xff]
        %v630 = vld [vmem:[#allocation8 + $0x10] sm:$0xff]
        %v631 = vld [vmem:[#allocation8 + $0x18] sm:$0xff]
        %v632 = vld [vmem:[#allocation8 + $0x20] sm:$0xff]
        %v633 = vld [vmem:[#allocation8 + $0x28] sm:$0xff]
        %v634 = vld [vmem:[#allocation8 + $0x30] sm:$0xff]
        %v635 = vld [vmem:[#allocation8 + $0x38] sm:$0xff]
        %v636 = vld [vmem:[#allocation8 + $0x40] sm:$0xff]
        %v637 = vld [vmem:[#allocation8 + $0x48] sm:$0xff]
        %v638 = vld [vmem:[#allocation8 + $0x50] sm:$0xff]
        %v639 = vld [vmem:[#allocation8 + $0x58] sm:$0xff]
        %v640 = vld [vmem:[#allocation8 + $0x60] sm:$0xff]
        %v641 = vld [vmem:[#allocation8 + $0x68] sm:$0xff]
        %v642 = vld [vmem:[#allocation8 + $0x70] sm:$0xff]
        %v643 = vld [vmem:[#allocation8 + $0x78] sm:$0xff]
        %644 = vmatpush.msra.mxu0 %v643
        %645 = vmatpush.msra.mxu0 %v642
        %646 = vmatpush.msra.mxu0 %v641
        %647 = vmatpush.msra.mxu0 %v640
        %648 = vmatpush.msra.mxu0 %v639
        %649 = vmatpush.msra.mxu0 %v638
        %650 = vmatpush.msra.mxu0 %v637
        %651 = vmatpush.msra.mxu0 %v636
        %652 = vmatpush.msra.mxu0 %v635
        %653 = vmatpush.msra.mxu0 %v634
        %654 = vmatpush.msra.mxu0 %v633
        %655 = vmatpush.msra.mxu0 %v632
        %656 = vmatpush.msra.mxu0 %v631
        %657 = vmatpush.msra.mxu0 %v630
        %658 = vmatpush.msra.mxu0 %v629
        %659 = vmatpush.msra.mxu0 %v628
        %660 = vmatmul.f32.gmra.mxu0 %v606
        %v661 = vpop.f32.mrf.mxu0
        %v662 = vadd.f32 0.0, %v661
        %663 = vdwg.mxu0
        %664 = vmatpush.msra.mxu0 %v627
        %665 = vmatpush.msra.mxu0 %v626
        %666 = vmatpush.msra.mxu0 %v625
        %667 = vmatpush.msra.mxu0 %v624
        %668 = vmatpush.msra.mxu0 %v623
        %669 = vmatpush.msra.mxu0 %v622
        %670 = vmatpush.msra.mxu0 %v621
        %671 = vmatpush.msra.mxu0 %v620
        %672 = vmatpush.msra.mxu0 %v619
        %673 = vmatpush.msra.mxu0 %v618
        %674 = vmatpush.msra.mxu0 %v617
        %675 = vmatpush.msra.mxu0 %v616
        %676 = vmatpush.msra.mxu0 %v615
        %677 = vmatpush.msra.mxu0 %v614
        %678 = vmatpush.msra.mxu0 %v613
        %679 = vmatpush.msra.mxu0 %v612
        %680 = vmatmul.f32.gmra.mxu0 %v601
        %v681 = vpop.f32.mrf.mxu0
        %v682 = vadd.f32 %v662, %v681
        %683 = vdwg.mxu0
        %s684 = scalar_lea.vmem [#allocation8], 256
        %v685 = vld [vmem:[%s684] sm:$0xff]
        %v686 = vld [vmem:[%s684 + $0x8] sm:$0xff]
        %v687 = vld [vmem:[%s684 + $0x10] sm:$0xff]
        %v688 = vld [vmem:[%s684 + $0x18] sm:$0xff]
        %v689 = vld [vmem:[%s684 + $0x20] sm:$0xff]
        %v690 = vld [vmem:[%s684 + $0x28] sm:$0xff]
        %v691 = vld [vmem:[%s684 + $0x30] sm:$0xff]
        %v692 = vld [vmem:[%s684 + $0x38] sm:$0xff]
        %v693 = vld [vmem:[%s684 + $0x40] sm:$0xff]
        %v694 = vld [vmem:[%s684 + $0x48] sm:$0xff]
        %v695 = vld [vmem:[%s684 + $0x50] sm:$0xff]
        %v696 = vld [vmem:[%s684 + $0x58] sm:$0xff]
        %v697 = vld [vmem:[%s684 + $0x60] sm:$0xff]
        %v698 = vld [vmem:[%s684 + $0x68] sm:$0xff]
        %v699 = vld [vmem:[%s684 + $0x70] sm:$0xff]
        %v700 = vld [vmem:[%s684 + $0x78] sm:$0xff]
        %701 = vmatpush.msra.mxu0 %v700
        %702 = vmatpush.msra.mxu0 %v699
        %703 = vmatpush.msra.mxu0 %v698
        %704 = vmatpush.msra.mxu0 %v697
        %705 = vmatpush.msra.mxu0 %v696
        %706 = vmatpush.msra.mxu0 %v695
        %707 = vmatpush.msra.mxu0 %v694
        %708 = vmatpush.msra.mxu0 %v693
        %709 = vmatpush.msra.mxu0 %v692
        %710 = vmatpush.msra.mxu0 %v691
        %711 = vmatpush.msra.mxu0 %v690
        %712 = vmatpush.msra.mxu0 %v689
        %713 = vmatpush.msra.mxu0 %v688
        %714 = vmatpush.msra.mxu0 %v687
        %715 = vmatpush.msra.mxu0 %v686
        %716 = vmatpush.msra.mxu0 %v685
        %717 = vmatmul.f32.gmra.mxu0 %v610
        %v718 = vpop.f32.mrf.mxu0
        %v719 = vadd.f32 0.0, %v718
        %720 = vdwg.mxu0
        %v721 = vadd.f32 %v682, %v719
        %v722 = vld [vmem:[%s6] sm:$0x1]
        %v724 = vperm.slane %v722, 0
        %v726 = vadd.f32 %v721, %v724
        %v727 = vxor.u32 %v726, 2147483648
        %v728 = vmul.f32 %v727, 1.442695
        %v729 = vpow.pop %v728
        %v730 = vadd.f32 %v729, 1.0
        %v731 = vrcp.pop %v730
        %v732 = vmul.f32 %v730, %v731
        %v733 = vsub.f32 1.0, %v732
        %v734 = vmul.f32 %v731, %v733
        %v735 = vadd.f32 %v731, %v734
        %vm736 = vweird.f32 %v730
        %vm737 = vweird.f32 %v731
        %vm738 = vmor %vm736, %vm737
        %v739 = vsel %vm738, %v731, %v735
        %v740 = vand.u32 2147483647, %v730
        %vm741 = vcmp.eq.f32.partialorder %v740, 8.507059e+37
        %v742 = vand.u32 %v730, 2147483648
        %v743 = vor.u32 1.1754944e-38, %v742
        %v744 = vsel %vm741, %v743, %v739
        %v745 = vmul.f32 1.0, %v744
        %v746 = vmul.f32 %v726, %v745
        %v747 = vld [vmem:[#allocation10] sm:$0xff]
        %v748 = vld [vmem:[#allocation10 + $0x8] sm:$0xff]
        %v749 = vld [vmem:[#allocation10 + $0x10] sm:$0xff]
        %v750 = vld [vmem:[#allocation10 + $0x18] sm:$0xff]
        %v751 = vld [vmem:[#allocation10 + $0x20] sm:$0xff]
        %v752 = vld [vmem:[#allocation10 + $0x28] sm:$0xff]
        %v753 = vld [vmem:[#allocation10 + $0x30] sm:$0xff]
        %v754 = vld [vmem:[#allocation10 + $0x38] sm:$0xff]
        %v755 = vld [vmem:[#allocation10 + $0x40] sm:$0xff]
        %v756 = vld [vmem:[#allocation10 + $0x48] sm:$0xff]
        %v757 = vld [vmem:[#allocation10 + $0x50] sm:$0xff]
        %v758 = vld [vmem:[#allocation10 + $0x58] sm:$0xff]
        %v759 = vld [vmem:[#allocation10 + $0x60] sm:$0xff]
        %v760 = vld [vmem:[#allocation10 + $0x68] sm:$0xff]
        %v761 = vld [vmem:[#allocation10 + $0x70] sm:$0xff]
        %v762 = vld [vmem:[#allocation10 + $0x78] sm:$0xff]
        %v763 = vld [vmem:[%s8] sm:$0x1]
        %v765 = vperm.slane %v763, 0
        %767 = vmatpush.msra.mxu0 %v762
        %768 = vmatpush.msra.mxu0 %v761
        %769 = vmatpush.msra.mxu0 %v760
        %770 = vmatpush.msra.mxu0 %v759
        %771 = vmatpush.msra.mxu0 %v758
        %772 = vmatpush.msra.mxu0 %v757
        %773 = vmatpush.msra.mxu0 %v756
        %774 = vmatpush.msra.mxu0 %v755
        %775 = vmatpush.msra.mxu0 %v754
        %776 = vmatpush.msra.mxu0 %v753
        %777 = vmatpush.msra.mxu0 %v752
        %778 = vmatpush.msra.mxu0 %v751
        %779 = vmatpush.msra.mxu0 %v750
        %780 = vmatpush.msra.mxu0 %v749
        %781 = vmatpush.msra.mxu0 %v748
        %782 = vmatpush.msra.mxu0 %v747
        %783 = vmatmul.f32.gmra.mxu0 %v746
        %v784 = vpop.f32.mrf.mxu0
        %v785 = vadd.f32 %v765, %v784
        %786 = vdwg.mxu0
        %787 = vst [vmem:[%s413] sm:$0xff] %v785
        %s788 = sand.u32 %s230, 1
        %s789 = scalar_lea.sflag [#allocation4], %s788
        %s790 = sand.u32 %s230, 1
        %s791 = smul.addr %s790, 8
        %s792 = scalar_lea.vmem [#allocation11], %s791
        // Predicated region
        $region77: #{tpu_custom_call.1} parent=55 // pred_check
          %p793 = pneg %p240
        $region78: #{tpu_custom_call.1} parent=55 // pred_check_branch
          %795 = sbr.rel (%p793) target = $region80
        $region79: #{tpu_custom_call.1} parent=55 // pred_region
          %797 = vsyncadd %s789, 0
          %s798 = smul.addr %s28, 8
          %s799 = scalar_lea.hbm %s9, %s798
          %s801 = sshll.u32 %s792, 4
          %s802 = int_to_ptr.vmem [resolvable:$true] %s801
          %s803 = sshll.u32 %s799, 4
          %s804 = int_to_ptr.hbm [resolvable:$true] %s803
          %806 = dma.vmem_to_hbm [thread:$0]  %s802, 128, %s804, %s789
        $region80: #{tpu_custom_call.1} parent=55 // pred_fallthru
          _
      $region56: #{tpu_custom_call.1} parent=5 // pred_fallthru
        _
      %p807 = scmp.le.s32.totalorder 2, %s23
      // Predicated region
      $region81: #{tpu_custom_call.1} parent=5 // pred_check
        %p808 = pneg %p807
      $region82: #{tpu_custom_call.1} parent=5 // pred_check_branch
        %810 = sbr.rel (%p808) target = $region84
      $region83: #{tpu_custom_call.1} parent=5 // pred_region
        %s811 = ssub.s32 %s23, 2
        // Predicated region
        $region85: #{tpu_custom_call.1} parent=83 // pred_check
          %p812 = pneg %p246
        $region86: #{tpu_custom_call.1} parent=83 // pred_check_branch
          %814 = sbr.rel (%p812) target = $region88
        $region87: #{tpu_custom_call.1} parent=83 // pred_region
          %s815 = sand.u32 %s231, 1
          %s816 = scalar_lea.sflag [#allocation4], %s815
          %s817 = sand.u32 %s231, 1
          %s818 = smul.addr %s817, 8
          %s819 = scalar_lea.vmem [#allocation11], %s818
          %821 = dma.done %s816, 128
        $region88: #{tpu_custom_call.1} parent=83 // pred_fallthru
          _
      $region84: #{tpu_custom_call.1} parent=5 // pred_fallthru
        _
    $region6: #{tpu_custom_call.1} parent=1 // loop_footer
      %s27 = sadd.s32 1, %s23
    $region7: #{tpu_custom_call.1} parent=1 // loop_footer_branch
      %22 = sbr.rel target = $region3
    $region8: #{tpu_custom_call.1} parent=1 // loop_exit
      _
    %822 = vsyncpa [#allocation3], 1
    %s823 = scalar_lea.sflag [#allocation3], 1
    %824 = vsyncpa %s823, 1
    %825 = vsyncpa [#allocation6], 1
    %826 = vsyncpa [#allocation9], 1
    %827 = vsyncpa [#allocation4], 1
    %s828 = scalar_lea.sflag [#allocation4], 1
    %829 = vsyncpa %s828, 1

</llo_original>
